<compile_context>
chip_gen: v6e
topology: v6e:2x2x1
jax: 0.10.0
libtpu: 0.0.40
codegen_flags: <defaults>
</compile_context>

<pallas_src>
import functools

import jax
import jax.numpy as jnp
from jax import lax
from jax.experimental import pallas as pl
from jax.experimental.pallas import tpu as pltpu

# ---- model hyper-parameters (small, consistent with the module) -------------
EMBED = 32          # embed_size
HEADS = 2           # num_heads
BLOCKS = 2          # num_blocks
FFN_HIDDEN = 64     # ffn_hidden
MAX_LEN = 16        # max_len
SEQ = 8             # actual sequence length used at call time
BATCH = 2
EPS = 1e-5          # layer_norm_eps
NEG_INF = -1e30     # finite "minus infinity" for the causal mask
LANES = 128         # TPU lane width; packed weight slab is lane-aligned


def _round_up(n, m):
    return (n + m - 1) // m * m


# ---- packed weight-slab layout (static row offsets per block) ---------------
# All sub-matrices start at lane 0; per-head q/k/v weights get their own
# sublane row ranges so the kernel never takes a lane-offset slice.
R_WQ = 0                          # HEADS*D rows: head h at [h*D,(h+1)*D), lanes 0:dh  (pre-scaled)
R_WK = R_WQ + HEADS * EMBED       # HEADS*D rows, lanes 0:dh
R_WV = R_WK + HEADS * EMBED       # HEADS*D rows, lanes 0:dh
R_WO = R_WV + HEADS * EMBED       # D rows, lanes 0:D (head h = rows [h*dh,(h+1)*dh))
R_W1 = R_WO + EMBED               # D rows, lanes 0:HF   (ffn fc1)
R_W2 = R_W1 + EMBED               # HF rows, lanes 0:D   (ffn fc2)
R_VEC = R_W2 + FFN_HIDDEN         # bias / LayerNorm rows
V_LN1_G = 0
V_LN1_B = 1
V_BQ = 2                          # HEADS rows, lanes 0:dh (pre-scaled)
V_BK = V_BQ + HEADS               # HEADS rows, lanes 0:dh
V_BV = V_BK + HEADS               # HEADS rows, lanes 0:dh
V_BO = V_BV + HEADS               # 1 row, lanes 0:D
V_LN2_G = V_BO + 1
V_LN2_B = V_BO + 2
V_B1 = V_BO + 3                   # lanes 0:HF
V_B2 = V_BO + 4                   # lanes 0:D
N_VEC = V_B2 + 1
# round to 16 rows: keeps every block base sublane-aligned for bf16 packing
BLOCK_ROWS = _round_up(R_VEC + N_VEC, 16)          # 336 rows per block


def _hdr_rows(seq_len):
    # header: positional embedding rows (L, D), padded to bf16 sublane tile
    return _round_up(seq_len, 16)


# ----------------------------- kernel -----------------------------------------
def _layernorm(x, g, b, eps):
    mu = jnp.mean(x, axis=-1, keepdims=True)
    xc = x - mu
    var = jnp.mean(xc * xc, axis=-1, keepdims=True)
    return xc * lax.rsqrt(var + eps) * g + b


def fused_transformer_kernel(x_ref, w_ref, o_ref, *, seq_len, num_heads,
                             num_blocks, eps, hdr_rows):
    D, Hf = EMBED, FFN_HIDDEN
    L = seq_len
    dh = D // num_heads

    # causal mask generated in-kernel (iota + compare; no DMA, no O(L^2) slab)
    rows = lax.broadcasted_iota(jnp.int32, (L, L), 0)
    cols = lax.broadcasted_iota(jnp.int32, (L, L), 1)
    allowed = cols <= rows

    pos = w_ref[0:L, 0:D].astype(jnp.float32)               # (L, D)
    # embedding scale + positional add (emb_dropout is identity in eval mode)
    x = x_ref[...] * (float(D) ** 0.5) + pos                 # (L, D) f32

    for blk in range(num_blocks):                            # static unroll
        off = hdr_rows + blk * BLOCK_ROWS
        vrow = off + R_VEC

        def vec(row, width):
            # one (1, width) bias / LayerNorm row, promoted to f32
            return w_ref[row:row + 1, 0:width].astype(jnp.float32)

        ln1_g, ln1_b = vec(vrow + V_LN1_G, D), vec(vrow + V_LN1_B, D)
        ln2_g, ln2_b = vec(vrow + V_LN2_G, D), vec(vrow + V_LN2_B, D)
        bo = vec(vrow + V_BO, D)
        b1 = vec(vrow + V_B1, Hf)
        b2 = vec(vrow + V_B2, D)

        # --- attention sub-layer (SASRec: only the query is layer-normed) ---
        q_in = _layernorm(x, ln1_g, ln1_b, eps)
        q_in_bf = q_in.astype(jnp.bfloat16)
        x_bf = x.astype(jnp.bfloat16)

        mha = jnp.broadcast_to(bo, (L, D))                   # start from out-proj bias
        for h in range(num_heads):                           # static unroll (H=2)
            # per-head weights: sublane row ranges starting at lane 0 -> no
            # lane-offset slices, no relayout copies
            wq_h = w_ref[off + R_WQ + h * D:off + R_WQ + (h + 1) * D, 0:dh]
            wk_h = w_ref[off + R_WK + h * D:off + R_WK + (h + 1) * D, 0:dh]
            wv_h = w_ref[off + R_WV + h * D:off + R_WV + (h + 1) * D, 0:dh]
            bq_h = vec(vrow + V_BQ + h, dh)
            bk_h = vec(vrow + V_BK + h, dh)
            bv_h = vec(vrow + V_BV + h, dh)

            qh = jnp.dot(q_in_bf, wq_h, preferred_element_type=jnp.float32) + bq_h
            kh = jnp.dot(x_bf, wk_h, preferred_element_type=jnp.float32) + bk_h
            vh = jnp.dot(x_bf, wv_h, preferred_element_type=jnp.float32) + bv_h

            # scores; 1/sqrt(dh) already folded into wq_h / bq_h at pack time
            s = lax.dot_general(qh, kh, (((1,), (1,)), ((), ())),
                                preferred_element_type=jnp.float32)
            s = jnp.where(allowed, s, NEG_INF)
            s = s - jnp.max(s, axis=-1, keepdims=True)
            p = jnp.exp(s)
            p = p * pl.reciprocal(jnp.sum(p, axis=-1, keepdims=True), approx=True)
            ctx = jnp.dot(p, vh, preferred_element_type=jnp.float32)

            # per-head row-slice of W_o (sublane slice), accumulated -> no concat
            wo_h = w_ref[off + R_WO + h * dh:off + R_WO + (h + 1) * dh, 0:D]
            mha = mha + jnp.dot(ctx.astype(jnp.bfloat16), wo_h,
                                preferred_element_type=jnp.float32)

        x = q_in + mha                    # residual adds the layer-normed query

        # --- point-wise feed-forward (residual around the layer-normed input) ---
        ff_in = _layernorm(x, ln2_g, ln2_b, eps)
        w1 = w_ref[off + R_W1:off + R_W1 + D, 0:Hf]
        w2 = w_ref[off + R_W2:off + R_W2 + Hf, 0:D]
        h1 = jnp.maximum(
            jnp.dot(ff_in.astype(jnp.bfloat16), w1,
                    preferred_element_type=jnp.float32) + b1, 0.0)
        x = ff_in + jnp.dot(h1.astype(jnp.bfloat16), w2,
                            preferred_element_type=jnp.float32) + b2
        # TODO(synk): attn_dropout / ffn_dropout / emb_dropout are identity (eval mode).

    o_ref[...] = x.astype(o_ref.dtype)


# ----------------------------- wrappers ---------------------------------------
def pack_params(params, seq_len):
    """Pack pos-emb and all block weights into ONE lane-aligned bf16 slab.

    Per-head W_q/W_k/W_v (and their biases) get separate sublane row ranges so
    every slice taken inside the kernel is sublane-aligned; the softmax scale
    is folded into W_q / b_q."""
    D, Hf, H, dh = EMBED, FFN_HIDDEN, HEADS, EMBED // HEADS
    hdr = _hdr_rows(seq_len)
    slab = jnp.zeros((hdr + BLOCKS * BLOCK_ROWS, LANES), jnp.float32)
    slab = slab.at[0:seq_len, 0:D].set(params["pos_emb"][:seq_len])

    sm_scale = 1.0 / float(dh) ** 0.5
    for i, blk in enumerate(params["blocks"]):
        off = hdr + i * BLOCK_ROWS
        vrow = off + R_VEC
        wq = blk["wq"] * sm_scale
        bq = blk["bq"][0] * sm_scale
        for h in range(H):
            lo = h * dh
            slab = slab.at[off + R_WQ + h * D:off + R_WQ + (h + 1) * D,
                           0:dh].set(wq[:, lo:lo + dh])
            slab = slab.at[off + R_WK + h * D:off + R_WK + (h + 1) * D,
                           0:dh].set(blk["wk"][:, lo:lo + dh])
            slab = slab.at[off + R_WV + h * D:off + R_WV + (h + 1) * D,
                           0:dh].set(blk["wv"][:, lo:lo + dh])
            slab = slab.at[vrow + V_BQ + h, 0:dh].set(bq[lo:lo + dh])
            slab = slab.at[vrow + V_BK + h, 0:dh].set(blk["bk"][0][lo:lo + dh])
            slab = slab.at[vrow + V_BV + h, 0:dh].set(blk["bv"][0][lo:lo + dh])
        slab = slab.at[off + R_WO:off + R_WO + D, 0:D].set(blk["wo"])
        slab = slab.at[off + R_W1:off + R_W1 + D, 0:Hf].set(blk["w1"])
        slab = slab.at[off + R_W2:off + R_W2 + Hf, 0:D].set(blk["w2"])
        slab = slab.at[vrow + V_LN1_G, 0:D].set(blk["ln1_g"][0])
        slab = slab.at[vrow + V_LN1_B, 0:D].set(blk["ln1_b"][0])
        slab = slab.at[vrow + V_BO, 0:D].set(blk["bo"][0])
        slab = slab.at[vrow + V_LN2_G, 0:D].set(blk["ln2_g"][0])
        slab = slab.at[vrow + V_LN2_B, 0:D].set(blk["ln2_b"][0])
        slab = slab.at[vrow + V_B1, 0:Hf].set(blk["b1"][0])
        slab = slab.at[vrow + V_B2, 0:D].set(blk["b2"][0])
    # bf16 weights: half the DMA / VMEM footprint, single-pass bf16 MXU issue
    return slab.astype(jnp.bfloat16)


@jax.jit
def transformer_forward(x, slab):
    B, L, D = x.shape
    assert D == EMBED and D % HEADS == 0
    kernel = functools.partial(
        fused_transformer_kernel, seq_len=L, num_heads=HEADS,
        num_blocks=BLOCKS, eps=EPS, hdr_rows=_hdr_rows(L))
    return pl.pallas_call(
        kernel,
        out_shape=jax.ShapeDtypeStruct((B, L, D), jnp.float32),
        grid=(B,),
        in_specs=[
            # one sequence per grid step -> per-sequence causal attention
            pl.BlockSpec((None, L, D), lambda b: (b, 0, 0)),
            # constant index_map: slab DMA'd once, VMEM-resident across grid
            pl.BlockSpec(slab.shape, lambda b: (0, 0)),
        ],
        out_specs=pl.BlockSpec((None, L, D), lambda b: (b, 0, 0)),
        compiler_params=pltpu.CompilerParams(
            # batch steps are independent: sharded across v7x's two TCs;
            # harmless serial loop on single-TC v5e/v6e.
            dimension_semantics=("parallel",)),
    )(x, slab)


# ----------------------- deterministic parameter init -------------------------
def init_params(key):
    keys = jax.random.split(key, 1 + BLOCKS)
    pos_emb = jax.random.normal(keys[0], (MAX_LEN, EMBED), jnp.float32) * 0.02
    blocks = []
    D, Hf = EMBED, FFN_HIDDEN
    for i in range(BLOCKS):
        k = jax.random.split(keys[1 + i], 8)
        in_proj_w = jax.random.normal(k[0], (3 * D, D), jnp.float32) * 0.05
        in_proj_b = jax.random.normal(k[1], (3 * D,), jnp.float32) * 0.02
        wq, wk, wv = in_proj_w[:D], in_proj_w[D:2 * D], in_proj_w[2 * D:]
        bq, bk, bv = in_proj_b[:D], in_proj_b[D:2 * D], in_proj_b[2 * D:]
        wo = jax.random.normal(k[2], (D, D), jnp.float32) * 0.05
        bo = jax.random.normal(k[3], (D,), jnp.float32) * 0.02
        w1 = jax.random.normal(k[4], (Hf, D), jnp.float32) * 0.05
        b1 = jax.random.normal(k[5], (Hf,), jnp.float32) * 0.02
        w2 = jax.random.normal(k[6], (D, Hf), jnp.float32) * 0.05
        b2 = jax.random.normal(k[7], (D,), jnp.float32) * 0.02
        blocks.append(dict(
            ln1_g=jnp.ones((1, D), jnp.float32), ln1_b=jnp.zeros((1, D), jnp.float32),
            # pre-transpose Linear weights so the kernel computes x @ W
            wq=wq.T, wk=wk.T, wv=wv.T,
            bq=bq[None, :], bk=bk[None, :], bv=bv[None, :],
            wo=wo.T, bo=bo[None, :],
            ln2_g=jnp.ones((1, D), jnp.float32), ln2_b=jnp.zeros((1, D), jnp.float32),
            w1=w1.T, b1=b1[None, :], w2=w2.T, b2=b2[None, :]))
    return dict(pos_emb=pos_emb, blocks=blocks)


# --------------------------- pure-JAX reference --------------------------------
def _ln_ref(x, g, b):
    mu = x.mean(-1, keepdims=True)
    var = ((x - mu) ** 2).mean(-1, keepdims=True)
    return (x - mu) / jnp.sqrt(var + EPS) * g + b


def reference_forward(x, params):
    B, L, D = x.shape
    dh = D // HEADS
    x = x * (D ** 0.5) + params["pos_emb"][:L][None]
    neg = jnp.where(jnp.triu(jnp.ones((L, L)), 1) > 0, -jnp.inf, 0.0)
    for blk in params["blocks"]:
        q_in = _ln_ref(x, blk["ln1_g"][0], blk["ln1_b"][0])
        q = q_in @ blk["wq"] + blk["bq"][0]
        k = x @ blk["wk"] + blk["bk"][0]
        v = x @ blk["wv"] + blk["bv"][0]
        qh = q.reshape(B, L, HEADS, dh).transpose(0, 2, 1, 3)
        kh = k.reshape(B, L, HEADS, dh).transpose(0, 2, 1, 3)
        vh = v.reshape(B, L, HEADS, dh).transpose(0, 2, 1, 3)
        s = jnp.einsum("bhqd,bhkd->bhqk", qh, kh) / (dh ** 0.5) + neg
        p = jax.nn.softmax(s, axis=-1)
        o = jnp.einsum("bhqk,bhkd->bhqd", p, vh).transpose(0, 2, 1, 3).reshape(B, L, D)
        mha = o @ blk["wo"] + blk["bo"][0]
        x = q_in + mha
        ff_in = _ln_ref(x, blk["ln2_g"][0], blk["ln2_b"][0])
        h1 = jax.nn.relu(ff_in @ blk["w1"] + blk["b1"][0])
        x = ff_in + h1 @ blk["w2"] + blk["b2"][0]
    return x


# --------------------------------- main ----------------------------------------
if __name__ == "__main__":
    key = jax.random.PRNGKey(0)
    k_param, k_x = jax.random.split(key)
    params = init_params(k_param)
    seq_embedding = jax.random.normal(k_x, (BATCH, SEQ, EMBED), jnp.float32)

    slab = pack_params(params, SEQ)      # one-time host-side weight packing
    out = transformer_forward(seq_embedding, slab)
    out = jax.block_until_ready(out)

    ref = reference_forward(seq_embedding, params)
    assert out.shape == (BATCH, SEQ, EMBED)
    # tolerance covers the bf16-packed weight slab and the approximate (EUP)
    # reciprocal in the softmax; structural errors would be O(1), i.e. orders
    # of magnitude larger.
    assert jnp.allclose(out, ref, rtol=3e-2, atol=3e-2), "mismatch vs JAX reference"

    print("KERNEL_OK")
</pallas_src>

<mosaic_0001>
module attributes {stable_mosaic.version = 11 : i64} {
  func.func @fused_transformer_kernel(%arg0: i32, %arg1: memref<1x8x32xf32, #tpu.memory_space<vmem>>, %arg2: memref<688x128xbf16, #tpu.memory_space<vmem>>, %arg3: memref<1x8x32xf32, #tpu.memory_space<vmem>>) attributes {dimension_semantics = [#tpu.dimension_semantics<parallel>], iteration_bounds = array<i64: 2>, scalar_prefetch = 0 : i64, scratch_operands = 0 : i64, tpu.core_type = #tpu.core_type<tc>, window_params = [{transform_indices = @transform_0, window_bounds = array<i64: 1, 8, 32>}, {pipeline_mode = #tpu.pipeline_mode<synchronous>, transform_indices = @transform_1, window_bounds = array<i64: 688, 128>}, {transform_indices = @transform_2, window_bounds = array<i64: 1, 8, 32>}]} {
    %0 = tpu.iota {dimensions = array<i32: 0>} : vector<8x8xi32>
    %1 = tpu.iota {dimensions = array<i32: 1>} : vector<8x8xi32>
    %2 = arith.cmpi sle, %1, %0 : vector<8x8xi32>
    %c0 = arith.constant 0 : index
    %c0_0 = arith.constant 0 : index
    %3 = vector.load %arg2[%c0, %c0_0] : memref<688x128xbf16, #tpu.memory_space<vmem>>, vector<8x32xbf16>
    %4 = arith.extf %3 : vector<8x32xbf16> to vector<8x32xf32>
    %c0_1 = arith.constant 0 : index
    %c0_2 = arith.constant 0 : index
    %c0_3 = arith.constant 0 : index
    %5 = vector.load %arg1[%c0_1, %c0_2, %c0_3] : memref<1x8x32xf32, #tpu.memory_space<vmem>>, vector<1x8x32xf32>
    %6 = vector.shape_cast %5 : vector<1x8x32xf32> to vector<8x32xf32>
    %cst = arith.constant 5.65685415 : f32
    %7 = vector.broadcast %cst : f32 to vector<8x32xf32>
    %8 = arith.mulf %6, %7 : vector<8x32xf32>
    %9 = arith.addf %8, %4 : vector<8x32xf32>
    %c336 = arith.constant 336 : index
    %c0_4 = arith.constant 0 : index
    %10 = vector.load %arg2[%c336, %c0_4] : memref<688x128xbf16, #tpu.memory_space<vmem>>, vector<1x32xbf16>
    %11 = arith.extf %10 : vector<1x32xbf16> to vector<1x32xf32>
    %c337 = arith.constant 337 : index
    %c0_5 = arith.constant 0 : index
    %12 = vector.load %arg2[%c337, %c0_5] : memref<688x128xbf16, #tpu.memory_space<vmem>>, vector<1x32xbf16>
    %13 = arith.extf %12 : vector<1x32xbf16> to vector<1x32xf32>
    %c345 = arith.constant 345 : index
    %c0_6 = arith.constant 0 : index
    %14 = vector.load %arg2[%c345, %c0_6] : memref<688x128xbf16, #tpu.memory_space<vmem>>, vector<1x32xbf16>
    %15 = arith.extf %14 : vector<1x32xbf16> to vector<1x32xf32>
    %c346 = arith.constant 346 : index
    %c0_7 = arith.constant 0 : index
    %16 = vector.load %arg2[%c346, %c0_7] : memref<688x128xbf16, #tpu.memory_space<vmem>>, vector<1x32xbf16>
    %17 = arith.extf %16 : vector<1x32xbf16> to vector<1x32xf32>
    %c344 = arith.constant 344 : index
    %c0_8 = arith.constant 0 : index
    %18 = vector.load %arg2[%c344, %c0_8] : memref<688x128xbf16, #tpu.memory_space<vmem>>, vector<1x32xbf16>
    %19 = arith.extf %18 : vector<1x32xbf16> to vector<1x32xf32>
    %c347 = arith.constant 347 : index
    %c0_9 = arith.constant 0 : index
    %20 = vector.load %arg2[%c347, %c0_9] : memref<688x128xbf16, #tpu.memory_space<vmem>>, vector<1x64xbf16>
    %21 = arith.extf %20 : vector<1x64xbf16> to vector<1x64xf32>
    %c348 = arith.constant 348 : index
    %c0_10 = arith.constant 0 : index
    %22 = vector.load %arg2[%c348, %c0_10] : memref<688x128xbf16, #tpu.memory_space<vmem>>, vector<1x32xbf16>
    %23 = arith.extf %22 : vector<1x32xbf16> to vector<1x32xf32>
    %cst_11 = arith.constant dense<0.000000e+00> : vector<8xf32>
    %24 = vector.multi_reduction <add>, %9, %cst_11 [1] : vector<8x32xf32> to vector<8xf32>
    %25 = vector.shape_cast %24 : vector<8xf32> to vector<8x1xf32>
    %cst_12 = arith.constant 3.200000e+01 : f32
    %26 = vector.broadcast %cst_12 : f32 to vector<8x1xf32>
    %27 = arith.divf %25, %26 : vector<8x1xf32>
    %28 = vector.broadcast %27 : vector<8x1xf32> to vector<8x32xf32>
    %29 = arith.subf %9, %28 : vector<8x32xf32>
    %30 = arith.mulf %29, %29 : vector<8x32xf32>
    %cst_13 = arith.constant dense<0.000000e+00> : vector<8xf32>
    %31 = vector.multi_reduction <add>, %30, %cst_13 [1] : vector<8x32xf32> to vector<8xf32>
    %32 = vector.shape_cast %31 : vector<8xf32> to vector<8x1xf32>
    %cst_14 = arith.constant 3.200000e+01 : f32
    %33 = vector.broadcast %cst_14 : f32 to vector<8x1xf32>
    %34 = arith.divf %32, %33 : vector<8x1xf32>
    %cst_15 = arith.constant 9.99999974E-6 : f32
    %35 = vector.broadcast %cst_15 : f32 to vector<8x1xf32>
    %36 = arith.addf %34, %35 : vector<8x1xf32>
    %37 = math.rsqrt %36 : vector<8x1xf32>
    %38 = vector.broadcast %37 : vector<8x1xf32> to vector<8x32xf32>
    %39 = arith.mulf %29, %38 : vector<8x32xf32>
    %40 = vector.broadcast %11 : vector<1x32xf32> to vector<8x32xf32>
    %41 = arith.mulf %39, %40 : vector<8x32xf32>
    %42 = vector.broadcast %13 : vector<1x32xf32> to vector<8x32xf32>
    %43 = arith.addf %41, %42 : vector<8x32xf32>
    %44 = arith.truncf %43 : vector<8x32xf32> to vector<8x32xbf16>
    %45 = arith.truncf %9 : vector<8x32xf32> to vector<8x32xbf16>
    %46 = vector.shape_cast %19 : vector<1x32xf32> to vector<1x32xf32>
    %47 = vector.broadcast %46 : vector<1x32xf32> to vector<8x32xf32>
    %c16 = arith.constant 16 : index
    %c0_16 = arith.constant 0 : index
    %48 = vector.load %arg2[%c16, %c0_16] : memref<688x128xbf16, #tpu.memory_space<vmem>>, vector<32x16xbf16>
    %c80 = arith.constant 80 : index
    %c0_17 = arith.constant 0 : index
    %49 = vector.load %arg2[%c80, %c0_17] : memref<688x128xbf16, #tpu.memory_space<vmem>>, vector<32x16xbf16>
    %c144 = arith.constant 144 : index
    %c0_18 = arith.constant 0 : index
    %50 = vector.load %arg2[%c144, %c0_18] : memref<688x128xbf16, #tpu.memory_space<vmem>>, vector<32x16xbf16>
    %c338 = arith.constant 338 : index
    %c0_19 = arith.constant 0 : index
    %51 = vector.load %arg2[%c338, %c0_19] : memref<688x128xbf16, #tpu.memory_space<vmem>>, vector<1x16xbf16>
    %52 = arith.extf %51 : vector<1x16xbf16> to vector<1x16xf32>
    %c340 = arith.constant 340 : index
    %c0_20 = arith.constant 0 : index
    %53 = vector.load %arg2[%c340, %c0_20] : memref<688x128xbf16, #tpu.memory_space<vmem>>, vector<1x16xbf16>
    %54 = arith.extf %53 : vector<1x16xbf16> to vector<1x16xf32>
    %c342 = arith.constant 342 : index
    %c0_21 = arith.constant 0 : index
    %55 = vector.load %arg2[%c342, %c0_21] : memref<688x128xbf16, #tpu.memory_space<vmem>>, vector<1x16xbf16>
    %56 = arith.extf %55 : vector<1x16xbf16> to vector<1x16xf32>
    %cst_22 = arith.constant dense<0.000000e+00> : vector<8x16xf32>
    %57 = tpu.matmul %44, %48, %cst_22 {dimension_numbers = #tpu.dot_dimension_numbers<[1], [0], [0], [1], [0, 0, 1, 1], [], []>} : vector<8x32xbf16>, vector<32x16xbf16>, vector<8x16xf32> -> vector<8x16xf32>
    %58 = vector.broadcast %52 : vector<1x16xf32> to vector<8x16xf32>
    %59 = arith.addf %57, %58 : vector<8x16xf32>
    %cst_23 = arith.constant dense<0.000000e+00> : vector<8x16xf32>
    %60 = tpu.matmul %45, %49, %cst_23 {dimension_numbers = #tpu.dot_dimension_numbers<[1], [0], [0], [1], [0, 0, 1, 1], [], []>} : vector<8x32xbf16>, vector<32x16xbf16>, vector<8x16xf32> -> vector<8x16xf32>
    %61 = vector.broadcast %54 : vector<1x16xf32> to vector<8x16xf32>
    %62 = arith.addf %60, %61 : vector<8x16xf32>
    %cst_24 = arith.constant dense<0.000000e+00> : vector<8x16xf32>
    %63 = tpu.matmul %45, %50, %cst_24 {dimension_numbers = #tpu.dot_dimension_numbers<[1], [0], [0], [1], [0, 0, 1, 1], [], []>} : vector<8x32xbf16>, vector<32x16xbf16>, vector<8x16xf32> -> vector<8x16xf32>
    %64 = vector.broadcast %56 : vector<1x16xf32> to vector<8x16xf32>
    %65 = arith.addf %63, %64 : vector<8x16xf32>
    %cst_25 = arith.constant dense<0.000000e+00> : vector<8x8xf32>
    %66 = tpu.matmul %59, %62, %cst_25 {dimension_numbers = #tpu.dot_dimension_numbers<[1], [1], [0], [0], [0, 0, 1, 0], [], []>} : vector<8x16xf32>, vector<8x16xf32>, vector<8x8xf32> -> vector<8x8xf32>
    %cst_26 = arith.constant -1.000000e+30 : f32
    %67 = vector.broadcast %cst_26 : f32 to vector<8x8xf32>
    %68 = arith.select %2, %66, %67 : vector<8x8xi1>, vector<8x8xf32>
    %cst_27 = arith.constant dense<0xFF800000> : vector<8xf32>
    %69 = vector.multi_reduction <maximumf>, %68, %cst_27 [1] : vector<8x8xf32> to vector<8xf32>
    %70 = vector.shape_cast %69 : vector<8xf32> to vector<8x1xf32>
    %71 = vector.broadcast %70 : vector<8x1xf32> to vector<8x8xf32>
    %72 = arith.subf %68, %71 : vector<8x8xf32>
    %73 = math.exp %72 : vector<8x8xf32>
    %cst_28 = arith.constant dense<0.000000e+00> : vector<8xf32>
    %74 = vector.multi_reduction <add>, %73, %cst_28 [1] : vector<8x8xf32> to vector<8xf32>
    %75 = vector.shape_cast %74 : vector<8xf32> to vector<8x1xf32>
    %76 = tpu.reciprocal %75 {approx = true} : vector<8x1xf32> -> vector<8x1xf32>
    %77 = vector.broadcast %76 : vector<8x1xf32> to vector<8x8xf32>
    %78 = arith.mulf %73, %77 : vector<8x8xf32>
    %cst_29 = arith.constant dense<0.000000e+00> : vector<8x16xf32>
    %79 = tpu.matmul %78, %65, %cst_29 {dimension_numbers = #tpu.dot_dimension_numbers<[1], [0], [0], [1], [0, 0, 1, 1], [], []>} : vector<8x8xf32>, vector<8x16xf32>, vector<8x16xf32> -> vector<8x16xf32>
    %c208 = arith.constant 208 : index
    %c0_30 = arith.constant 0 : index
    %80 = vector.load %arg2[%c208, %c0_30] : memref<688x128xbf16, #tpu.memory_space<vmem>>, vector<16x32xbf16>
    %81 = arith.truncf %79 : vector<8x16xf32> to vector<8x16xbf16>
    %cst_31 = arith.constant dense<0.000000e+00> : vector<8x32xf32>
    %82 = tpu.matmul %81, %80, %cst_31 {dimension_numbers = #tpu.dot_dimension_numbers<[1], [0], [0], [1], [0, 0, 1, 1], [], []>} : vector<8x16xbf16>, vector<16x32xbf16>, vector<8x32xf32> -> vector<8x32xf32>
    %83 = arith.addf %47, %82 : vector<8x32xf32>
    %c48 = arith.constant 48 : index
    %c0_32 = arith.constant 0 : index
    %84 = vector.load %arg2[%c48, %c0_32] : memref<688x128xbf16, #tpu.memory_space<vmem>>, vector<32x16xbf16>
    %c112 = arith.constant 112 : index
    %c0_33 = arith.constant 0 : index
    %85 = vector.load %arg2[%c112, %c0_33] : memref<688x128xbf16, #tpu.memory_space<vmem>>, vector<32x16xbf16>
    %c176 = arith.constant 176 : index
    %c0_34 = arith.constant 0 : index
    %86 = vector.load %arg2[%c176, %c0_34] : memref<688x128xbf16, #tpu.memory_space<vmem>>, vector<32x16xbf16>
    %c339 = arith.constant 339 : index
    %c0_35 = arith.constant 0 : index
    %87 = vector.load %arg2[%c339, %c0_35] : memref<688x128xbf16, #tpu.memory_space<vmem>>, vector<1x16xbf16>
    %88 = arith.extf %87 : vector<1x16xbf16> to vector<1x16xf32>
    %c341 = arith.constant 341 : index
    %c0_36 = arith.constant 0 : index
    %89 = vector.load %arg2[%c341, %c0_36] : memref<688x128xbf16, #tpu.memory_space<vmem>>, vector<1x16xbf16>
    %90 = arith.extf %89 : vector<1x16xbf16> to vector<1x16xf32>
    %c343 = arith.constant 343 : index
    %c0_37 = arith.constant 0 : index
    %91 = vector.load %arg2[%c343, %c0_37] : memref<688x128xbf16, #tpu.memory_space<vmem>>, vector<1x16xbf16>
    %92 = arith.extf %91 : vector<1x16xbf16> to vector<1x16xf32>
    %cst_38 = arith.constant dense<0.000000e+00> : vector<8x16xf32>
    %93 = tpu.matmul %44, %84, %cst_38 {dimension_numbers = #tpu.dot_dimension_numbers<[1], [0], [0], [1], [0, 0, 1, 1], [], []>} : vector<8x32xbf16>, vector<32x16xbf16>, vector<8x16xf32> -> vector<8x16xf32>
    %94 = vector.broadcast %88 : vector<1x16xf32> to vector<8x16xf32>
    %95 = arith.addf %93, %94 : vector<8x16xf32>
    %cst_39 = arith.constant dense<0.000000e+00> : vector<8x16xf32>
    %96 = tpu.matmul %45, %85, %cst_39 {dimension_numbers = #tpu.dot_dimension_numbers<[1], [0], [0], [1], [0, 0, 1, 1], [], []>} : vector<8x32xbf16>, vector<32x16xbf16>, vector<8x16xf32> -> vector<8x16xf32>
    %97 = vector.broadcast %90 : vector<1x16xf32> to vector<8x16xf32>
    %98 = arith.addf %96, %97 : vector<8x16xf32>
    %cst_40 = arith.constant dense<0.000000e+00> : vector<8x16xf32>
    %99 = tpu.matmul %45, %86, %cst_40 {dimension_numbers = #tpu.dot_dimension_numbers<[1], [0], [0], [1], [0, 0, 1, 1], [], []>} : vector<8x32xbf16>, vector<32x16xbf16>, vector<8x16xf32> -> vector<8x16xf32>
    %100 = vector.broadcast %92 : vector<1x16xf32> to vector<8x16xf32>
    %101 = arith.addf %99, %100 : vector<8x16xf32>
    %cst_41 = arith.constant dense<0.000000e+00> : vector<8x8xf32>
    %102 = tpu.matmul %95, %98, %cst_41 {dimension_numbers = #tpu.dot_dimension_numbers<[1], [1], [0], [0], [0, 0, 1, 0], [], []>} : vector<8x16xf32>, vector<8x16xf32>, vector<8x8xf32> -> vector<8x8xf32>
    %cst_42 = arith.constant -1.000000e+30 : f32
    %103 = vector.broadcast %cst_42 : f32 to vector<8x8xf32>
    %104 = arith.select %2, %102, %103 : vector<8x8xi1>, vector<8x8xf32>
    %cst_43 = arith.constant dense<0xFF800000> : vector<8xf32>
    %105 = vector.multi_reduction <maximumf>, %104, %cst_43 [1] : vector<8x8xf32> to vector<8xf32>
    %106 = vector.shape_cast %105 : vector<8xf32> to vector<8x1xf32>
    %107 = vector.broadcast %106 : vector<8x1xf32> to vector<8x8xf32>
    %108 = arith.subf %104, %107 : vector<8x8xf32>
    %109 = math.exp %108 : vector<8x8xf32>
    %cst_44 = arith.constant dense<0.000000e+00> : vector<8xf32>
    %110 = vector.multi_reduction <add>, %109, %cst_44 [1] : vector<8x8xf32> to vector<8xf32>
    %111 = vector.shape_cast %110 : vector<8xf32> to vector<8x1xf32>
    %112 = tpu.reciprocal %111 {approx = true} : vector<8x1xf32> -> vector<8x1xf32>
    %113 = vector.broadcast %112 : vector<8x1xf32> to vector<8x8xf32>
    %114 = arith.mulf %109, %113 : vector<8x8xf32>
    %cst_45 = arith.constant dense<0.000000e+00> : vector<8x16xf32>
    %115 = tpu.matmul %114, %101, %cst_45 {dimension_numbers = #tpu.dot_dimension_numbers<[1], [0], [0], [1], [0, 0, 1, 1], [], []>} : vector<8x8xf32>, vector<8x16xf32>, vector<8x16xf32> -> vector<8x16xf32>
    %c224 = arith.constant 224 : index
    %c0_46 = arith.constant 0 : index
    %116 = vector.load %arg2[%c224, %c0_46] : memref<688x128xbf16, #tpu.memory_space<vmem>>, vector<16x32xbf16>
    %117 = arith.truncf %115 : vector<8x16xf32> to vector<8x16xbf16>
    %cst_47 = arith.constant dense<0.000000e+00> : vector<8x32xf32>
    %118 = tpu.matmul %117, %116, %cst_47 {dimension_numbers = #tpu.dot_dimension_numbers<[1], [0], [0], [1], [0, 0, 1, 1], [], []>} : vector<8x16xbf16>, vector<16x32xbf16>, vector<8x32xf32> -> vector<8x32xf32>
    %119 = arith.addf %83, %118 : vector<8x32xf32>
    %120 = arith.addf %43, %119 : vector<8x32xf32>
    %cst_48 = arith.constant dense<0.000000e+00> : vector<8xf32>
    %121 = vector.multi_reduction <add>, %120, %cst_48 [1] : vector<8x32xf32> to vector<8xf32>
    %122 = vector.shape_cast %121 : vector<8xf32> to vector<8x1xf32>
    %cst_49 = arith.constant 3.200000e+01 : f32
    %123 = vector.broadcast %cst_49 : f32 to vector<8x1xf32>
    %124 = arith.divf %122, %123 : vector<8x1xf32>
    %125 = vector.broadcast %124 : vector<8x1xf32> to vector<8x32xf32>
    %126 = arith.subf %120, %125 : vector<8x32xf32>
    %127 = arith.mulf %126, %126 : vector<8x32xf32>
    %cst_50 = arith.constant dense<0.000000e+00> : vector<8xf32>
    %128 = vector.multi_reduction <add>, %127, %cst_50 [1] : vector<8x32xf32> to vector<8xf32>
    %129 = vector.shape_cast %128 : vector<8xf32> to vector<8x1xf32>
    %cst_51 = arith.constant 3.200000e+01 : f32
    %130 = vector.broadcast %cst_51 : f32 to vector<8x1xf32>
    %131 = arith.divf %129, %130 : vector<8x1xf32>
    %cst_52 = arith.constant 9.99999974E-6 : f32
    %132 = vector.broadcast %cst_52 : f32 to vector<8x1xf32>
    %133 = arith.addf %131, %132 : vector<8x1xf32>
    %134 = math.rsqrt %133 : vector<8x1xf32>
    %135 = vector.broadcast %134 : vector<8x1xf32> to vector<8x32xf32>
    %136 = arith.mulf %126, %135 : vector<8x32xf32>
    %137 = vector.broadcast %15 : vector<1x32xf32> to vector<8x32xf32>
    %138 = arith.mulf %136, %137 : vector<8x32xf32>
    %139 = vector.broadcast %17 : vector<1x32xf32> to vector<8x32xf32>
    %140 = arith.addf %138, %139 : vector<8x32xf32>
    %c240 = arith.constant 240 : index
    %c0_53 = arith.constant 0 : index
    %141 = vector.load %arg2[%c240, %c0_53] : memref<688x128xbf16, #tpu.memory_space<vmem>>, vector<32x64xbf16>
    %c272 = arith.constant 272 : index
    %c0_54 = arith.constant 0 : index
    %142 = vector.load %arg2[%c272, %c0_54] : memref<688x128xbf16, #tpu.memory_space<vmem>>, vector<64x32xbf16>
    %143 = arith.truncf %140 : vector<8x32xf32> to vector<8x32xbf16>
    %cst_55 = arith.constant dense<0.000000e+00> : vector<8x64xf32>
    %144 = tpu.matmul %143, %141, %cst_55 {dimension_numbers = #tpu.dot_dimension_numbers<[1], [0], [0], [1], [0, 0, 1, 1], [], []>} : vector<8x32xbf16>, vector<32x64xbf16>, vector<8x64xf32> -> vector<8x64xf32>
    %145 = vector.broadcast %21 : vector<1x64xf32> to vector<8x64xf32>
    %146 = arith.addf %144, %145 : vector<8x64xf32>
    %cst_56 = arith.constant 0.000000e+00 : f32
    %147 = vector.broadcast %cst_56 : f32 to vector<8x64xf32>
    %148 = arith.maximumf %146, %147 : vector<8x64xf32>
    %149 = arith.truncf %148 : vector<8x64xf32> to vector<8x64xbf16>
    %cst_57 = arith.constant dense<0.000000e+00> : vector<8x32xf32>
    %150 = tpu.matmul %149, %142, %cst_57 {dimension_numbers = #tpu.dot_dimension_numbers<[1], [0], [0], [1], [0, 0, 1, 1], [], []>} : vector<8x64xbf16>, vector<64x32xbf16>, vector<8x32xf32> -> vector<8x32xf32>
    %151 = arith.addf %140, %150 : vector<8x32xf32>
    %152 = vector.broadcast %23 : vector<1x32xf32> to vector<8x32xf32>
    %153 = arith.addf %151, %152 : vector<8x32xf32>
    %c672 = arith.constant 672 : index
    %c0_58 = arith.constant 0 : index
    %154 = vector.load %arg2[%c672, %c0_58] : memref<688x128xbf16, #tpu.memory_space<vmem>>, vector<1x32xbf16>
    %155 = arith.extf %154 : vector<1x32xbf16> to vector<1x32xf32>
    %c673 = arith.constant 673 : index
    %c0_59 = arith.constant 0 : index
    %156 = vector.load %arg2[%c673, %c0_59] : memref<688x128xbf16, #tpu.memory_space<vmem>>, vector<1x32xbf16>
    %157 = arith.extf %156 : vector<1x32xbf16> to vector<1x32xf32>
    %c681 = arith.constant 681 : index
    %c0_60 = arith.constant 0 : index
    %158 = vector.load %arg2[%c681, %c0_60] : memref<688x128xbf16, #tpu.memory_space<vmem>>, vector<1x32xbf16>
    %159 = arith.extf %158 : vector<1x32xbf16> to vector<1x32xf32>
    %c682 = arith.constant 682 : index
    %c0_61 = arith.constant 0 : index
    %160 = vector.load %arg2[%c682, %c0_61] : memref<688x128xbf16, #tpu.memory_space<vmem>>, vector<1x32xbf16>
    %161 = arith.extf %160 : vector<1x32xbf16> to vector<1x32xf32>
    %c680 = arith.constant 680 : index
    %c0_62 = arith.constant 0 : index
    %162 = vector.load %arg2[%c680, %c0_62] : memref<688x128xbf16, #tpu.memory_space<vmem>>, vector<1x32xbf16>
    %163 = arith.extf %162 : vector<1x32xbf16> to vector<1x32xf32>
    %c683 = arith.constant 683 : index
    %c0_63 = arith.constant 0 : index
    %164 = vector.load %arg2[%c683, %c0_63] : memref<688x128xbf16, #tpu.memory_space<vmem>>, vector<1x64xbf16>
    %165 = arith.extf %164 : vector<1x64xbf16> to vector<1x64xf32>
    %c684 = arith.constant 684 : index
    %c0_64 = arith.constant 0 : index
    %166 = vector.load %arg2[%c684, %c0_64] : memref<688x128xbf16, #tpu.memory_space<vmem>>, vector<1x32xbf16>
    %167 = arith.extf %166 : vector<1x32xbf16> to vector<1x32xf32>
    %cst_65 = arith.constant dense<0.000000e+00> : vector<8xf32>
    %168 = vector.multi_reduction <add>, %153, %cst_65 [1] : vector<8x32xf32> to vector<8xf32>
    %169 = vector.shape_cast %168 : vector<8xf32> to vector<8x1xf32>
    %cst_66 = arith.constant 3.200000e+01 : f32
    %170 = vector.broadcast %cst_66 : f32 to vector<8x1xf32>
    %171 = arith.divf %169, %170 : vector<8x1xf32>
    %172 = vector.broadcast %171 : vector<8x1xf32> to vector<8x32xf32>
    %173 = arith.subf %153, %172 : vector<8x32xf32>
    %174 = arith.mulf %173, %173 : vector<8x32xf32>
    %cst_67 = arith.constant dense<0.000000e+00> : vector<8xf32>
    %175 = vector.multi_reduction <add>, %174, %cst_67 [1] : vector<8x32xf32> to vector<8xf32>
    %176 = vector.shape_cast %175 : vector<8xf32> to vector<8x1xf32>
    %cst_68 = arith.constant 3.200000e+01 : f32
    %177 = vector.broadcast %cst_68 : f32 to vector<8x1xf32>
    %178 = arith.divf %176, %177 : vector<8x1xf32>
    %cst_69 = arith.constant 9.99999974E-6 : f32
    %179 = vector.broadcast %cst_69 : f32 to vector<8x1xf32>
    %180 = arith.addf %178, %179 : vector<8x1xf32>
    %181 = math.rsqrt %180 : vector<8x1xf32>
    %182 = vector.broadcast %181 : vector<8x1xf32> to vector<8x32xf32>
    %183 = arith.mulf %173, %182 : vector<8x32xf32>
    %184 = vector.broadcast %155 : vector<1x32xf32> to vector<8x32xf32>
    %185 = arith.mulf %183, %184 : vector<8x32xf32>
    %186 = vector.broadcast %157 : vector<1x32xf32> to vector<8x32xf32>
    %187 = arith.addf %185, %186 : vector<8x32xf32>
    %188 = arith.truncf %187 : vector<8x32xf32> to vector<8x32xbf16>
    %189 = arith.truncf %153 : vector<8x32xf32> to vector<8x32xbf16>
    %190 = vector.shape_cast %163 : vector<1x32xf32> to vector<1x32xf32>
    %191 = vector.broadcast %190 : vector<1x32xf32> to vector<8x32xf32>
    %c352 = arith.constant 352 : index
    %c0_70 = arith.constant 0 : index
    %192 = vector.load %arg2[%c352, %c0_70] : memref<688x128xbf16, #tpu.memory_space<vmem>>, vector<32x16xbf16>
    %c416 = arith.constant 416 : index
    %c0_71 = arith.constant 0 : index
    %193 = vector.load %arg2[%c416, %c0_71] : memref<688x128xbf16, #tpu.memory_space<vmem>>, vector<32x16xbf16>
    %c480 = arith.constant 480 : index
    %c0_72 = arith.constant 0 : index
    %194 = vector.load %arg2[%c480, %c0_72] : memref<688x128xbf16, #tpu.memory_space<vmem>>, vector<32x16xbf16>
    %c674 = arith.constant 674 : index
    %c0_73 = arith.constant 0 : index
    %195 = vector.load %arg2[%c674, %c0_73] : memref<688x128xbf16, #tpu.memory_space<vmem>>, vector<1x16xbf16>
    %196 = arith.extf %195 : vector<1x16xbf16> to vector<1x16xf32>
    %c676 = arith.constant 676 : index
    %c0_74 = arith.constant 0 : index
    %197 = vector.load %arg2[%c676, %c0_74] : memref<688x128xbf16, #tpu.memory_space<vmem>>, vector<1x16xbf16>
    %198 = arith.extf %197 : vector<1x16xbf16> to vector<1x16xf32>
    %c678 = arith.constant 678 : index
    %c0_75 = arith.constant 0 : index
    %199 = vector.load %arg2[%c678, %c0_75] : memref<688x128xbf16, #tpu.memory_space<vmem>>, vector<1x16xbf16>
    %200 = arith.extf %199 : vector<1x16xbf16> to vector<1x16xf32>
    %cst_76 = arith.constant dense<0.000000e+00> : vector<8x16xf32>
    %201 = tpu.matmul %188, %192, %cst_76 {dimension_numbers = #tpu.dot_dimension_numbers<[1], [0], [0], [1], [0, 0, 1, 1], [], []>} : vector<8x32xbf16>, vector<32x16xbf16>, vector<8x16xf32> -> vector<8x16xf32>
    %202 = vector.broadcast %196 : vector<1x16xf32> to vector<8x16xf32>
    %203 = arith.addf %201, %202 : vector<8x16xf32>
    %cst_77 = arith.constant dense<0.000000e+00> : vector<8x16xf32>
    %204 = tpu.matmul %189, %193, %cst_77 {dimension_numbers = #tpu.dot_dimension_numbers<[1], [0], [0], [1], [0, 0, 1, 1], [], []>} : vector<8x32xbf16>, vector<32x16xbf16>, vector<8x16xf32> -> vector<8x16xf32>
    %205 = vector.broadcast %198 : vector<1x16xf32> to vector<8x16xf32>
    %206 = arith.addf %204, %205 : vector<8x16xf32>
    %cst_78 = arith.constant dense<0.000000e+00> : vector<8x16xf32>
    %207 = tpu.matmul %189, %194, %cst_78 {dimension_numbers = #tpu.dot_dimension_numbers<[1], [0], [0], [1], [0, 0, 1, 1], [], []>} : vector<8x32xbf16>, vector<32x16xbf16>, vector<8x16xf32> -> vector<8x16xf32>
    %208 = vector.broadcast %200 : vector<1x16xf32> to vector<8x16xf32>
    %209 = arith.addf %207, %208 : vector<8x16xf32>
    %cst_79 = arith.constant dense<0.000000e+00> : vector<8x8xf32>
    %210 = tpu.matmul %203, %206, %cst_79 {dimension_numbers = #tpu.dot_dimension_numbers<[1], [1], [0], [0], [0, 0, 1, 0], [], []>} : vector<8x16xf32>, vector<8x16xf32>, vector<8x8xf32> -> vector<8x8xf32>
    %cst_80 = arith.constant -1.000000e+30 : f32
    %211 = vector.broadcast %cst_80 : f32 to vector<8x8xf32>
    %212 = arith.select %2, %210, %211 : vector<8x8xi1>, vector<8x8xf32>
    %cst_81 = arith.constant dense<0xFF800000> : vector<8xf32>
    %213 = vector.multi_reduction <maximumf>, %212, %cst_81 [1] : vector<8x8xf32> to vector<8xf32>
    %214 = vector.shape_cast %213 : vector<8xf32> to vector<8x1xf32>
    %215 = vector.broadcast %214 : vector<8x1xf32> to vector<8x8xf32>
    %216 = arith.subf %212, %215 : vector<8x8xf32>
    %217 = math.exp %216 : vector<8x8xf32>
    %cst_82 = arith.constant dense<0.000000e+00> : vector<8xf32>
    %218 = vector.multi_reduction <add>, %217, %cst_82 [1] : vector<8x8xf32> to vector<8xf32>
    %219 = vector.shape_cast %218 : vector<8xf32> to vector<8x1xf32>
    %220 = tpu.reciprocal %219 {approx = true} : vector<8x1xf32> -> vector<8x1xf32>
    %221 = vector.broadcast %220 : vector<8x1xf32> to vector<8x8xf32>
    %222 = arith.mulf %217, %221 : vector<8x8xf32>
    %cst_83 = arith.constant dense<0.000000e+00> : vector<8x16xf32>
    %223 = tpu.matmul %222, %209, %cst_83 {dimension_numbers = #tpu.dot_dimension_numbers<[1], [0], [0], [1], [0, 0, 1, 1], [], []>} : vector<8x8xf32>, vector<8x16xf32>, vector<8x16xf32> -> vector<8x16xf32>
    %c544 = arith.constant 544 : index
    %c0_84 = arith.constant 0 : index
    %224 = vector.load %arg2[%c544, %c0_84] : memref<688x128xbf16, #tpu.memory_space<vmem>>, vector<16x32xbf16>
    %225 = arith.truncf %223 : vector<8x16xf32> to vector<8x16xbf16>
    %cst_85 = arith.constant dense<0.000000e+00> : vector<8x32xf32>
    %226 = tpu.matmul %225, %224, %cst_85 {dimension_numbers = #tpu.dot_dimension_numbers<[1], [0], [0], [1], [0, 0, 1, 1], [], []>} : vector<8x16xbf16>, vector<16x32xbf16>, vector<8x32xf32> -> vector<8x32xf32>
    %227 = arith.addf %191, %226 : vector<8x32xf32>
    %c384 = arith.constant 384 : index
    %c0_86 = arith.constant 0 : index
    %228 = vector.load %arg2[%c384, %c0_86] : memref<688x128xbf16, #tpu.memory_space<vmem>>, vector<32x16xbf16>
    %c448 = arith.constant 448 : index
    %c0_87 = arith.constant 0 : index
    %229 = vector.load %arg2[%c448, %c0_87] : memref<688x128xbf16, #tpu.memory_space<vmem>>, vector<32x16xbf16>
    %c512 = arith.constant 512 : index
    %c0_88 = arith.constant 0 : index
    %230 = vector.load %arg2[%c512, %c0_88] : memref<688x128xbf16, #tpu.memory_space<vmem>>, vector<32x16xbf16>
    %c675 = arith.constant 675 : index
    %c0_89 = arith.constant 0 : index
    %231 = vector.load %arg2[%c675, %c0_89] : memref<688x128xbf16, #tpu.memory_space<vmem>>, vector<1x16xbf16>
    %232 = arith.extf %231 : vector<1x16xbf16> to vector<1x16xf32>
    %c677 = arith.constant 677 : index
    %c0_90 = arith.constant 0 : index
    %233 = vector.load %arg2[%c677, %c0_90] : memref<688x128xbf16, #tpu.memory_space<vmem>>, vector<1x16xbf16>
    %234 = arith.extf %233 : vector<1x16xbf16> to vector<1x16xf32>
    %c679 = arith.constant 679 : index
    %c0_91 = arith.constant 0 : index
    %235 = vector.load %arg2[%c679, %c0_91] : memref<688x128xbf16, #tpu.memory_space<vmem>>, vector<1x16xbf16>
    %236 = arith.extf %235 : vector<1x16xbf16> to vector<1x16xf32>
    %cst_92 = arith.constant dense<0.000000e+00> : vector<8x16xf32>
    %237 = tpu.matmul %188, %228, %cst_92 {dimension_numbers = #tpu.dot_dimension_numbers<[1], [0], [0], [1], [0, 0, 1, 1], [], []>} : vector<8x32xbf16>, vector<32x16xbf16>, vector<8x16xf32> -> vector<8x16xf32>
    %238 = vector.broadcast %232 : vector<1x16xf32> to vector<8x16xf32>
    %239 = arith.addf %237, %238 : vector<8x16xf32>
    %cst_93 = arith.constant dense<0.000000e+00> : vector<8x16xf32>
    %240 = tpu.matmul %189, %229, %cst_93 {dimension_numbers = #tpu.dot_dimension_numbers<[1], [0], [0], [1], [0, 0, 1, 1], [], []>} : vector<8x32xbf16>, vector<32x16xbf16>, vector<8x16xf32> -> vector<8x16xf32>
    %241 = vector.broadcast %234 : vector<1x16xf32> to vector<8x16xf32>
    %242 = arith.addf %240, %241 : vector<8x16xf32>
    %cst_94 = arith.constant dense<0.000000e+00> : vector<8x16xf32>
    %243 = tpu.matmul %189, %230, %cst_94 {dimension_numbers = #tpu.dot_dimension_numbers<[1], [0], [0], [1], [0, 0, 1, 1], [], []>} : vector<8x32xbf16>, vector<32x16xbf16>, vector<8x16xf32> -> vector<8x16xf32>
    %244 = vector.broadcast %236 : vector<1x16xf32> to vector<8x16xf32>
    %245 = arith.addf %243, %244 : vector<8x16xf32>
    %cst_95 = arith.constant dense<0.000000e+00> : vector<8x8xf32>
    %246 = tpu.matmul %239, %242, %cst_95 {dimension_numbers = #tpu.dot_dimension_numbers<[1], [1], [0], [0], [0, 0, 1, 0], [], []>} : vector<8x16xf32>, vector<8x16xf32>, vector<8x8xf32> -> vector<8x8xf32>
    %cst_96 = arith.constant -1.000000e+30 : f32
    %247 = vector.broadcast %cst_96 : f32 to vector<8x8xf32>
    %248 = arith.select %2, %246, %247 : vector<8x8xi1>, vector<8x8xf32>
    %cst_97 = arith.constant dense<0xFF800000> : vector<8xf32>
    %249 = vector.multi_reduction <maximumf>, %248, %cst_97 [1] : vector<8x8xf32> to vector<8xf32>
    %250 = vector.shape_cast %249 : vector<8xf32> to vector<8x1xf32>
    %251 = vector.broadcast %250 : vector<8x1xf32> to vector<8x8xf32>
    %252 = arith.subf %248, %251 : vector<8x8xf32>
    %253 = math.exp %252 : vector<8x8xf32>
    %cst_98 = arith.constant dense<0.000000e+00> : vector<8xf32>
    %254 = vector.multi_reduction <add>, %253, %cst_98 [1] : vector<8x8xf32> to vector<8xf32>
    %255 = vector.shape_cast %254 : vector<8xf32> to vector<8x1xf32>
    %256 = tpu.reciprocal %255 {approx = true} : vector<8x1xf32> -> vector<8x1xf32>
    %257 = vector.broadcast %256 : vector<8x1xf32> to vector<8x8xf32>
    %258 = arith.mulf %253, %257 : vector<8x8xf32>
    %cst_99 = arith.constant dense<0.000000e+00> : vector<8x16xf32>
    %259 = tpu.matmul %258, %245, %cst_99 {dimension_numbers = #tpu.dot_dimension_numbers<[1], [0], [0], [1], [0, 0, 1, 1], [], []>} : vector<8x8xf32>, vector<8x16xf32>, vector<8x16xf32> -> vector<8x16xf32>
    %c560 = arith.constant 560 : index
    %c0_100 = arith.constant 0 : index
    %260 = vector.load %arg2[%c560, %c0_100] : memref<688x128xbf16, #tpu.memory_space<vmem>>, vector<16x32xbf16>
    %261 = arith.truncf %259 : vector<8x16xf32> to vector<8x16xbf16>
    %cst_101 = arith.constant dense<0.000000e+00> : vector<8x32xf32>
    %262 = tpu.matmul %261, %260, %cst_101 {dimension_numbers = #tpu.dot_dimension_numbers<[1], [0], [0], [1], [0, 0, 1, 1], [], []>} : vector<8x16xbf16>, vector<16x32xbf16>, vector<8x32xf32> -> vector<8x32xf32>
    %263 = arith.addf %227, %262 : vector<8x32xf32>
    %264 = arith.addf %187, %263 : vector<8x32xf32>
    %cst_102 = arith.constant dense<0.000000e+00> : vector<8xf32>
    %265 = vector.multi_reduction <add>, %264, %cst_102 [1] : vector<8x32xf32> to vector<8xf32>
    %266 = vector.shape_cast %265 : vector<8xf32> to vector<8x1xf32>
    %cst_103 = arith.constant 3.200000e+01 : f32
    %267 = vector.broadcast %cst_103 : f32 to vector<8x1xf32>
    %268 = arith.divf %266, %267 : vector<8x1xf32>
    %269 = vector.broadcast %268 : vector<8x1xf32> to vector<8x32xf32>
    %270 = arith.subf %264, %269 : vector<8x32xf32>
    %271 = arith.mulf %270, %270 : vector<8x32xf32>
    %cst_104 = arith.constant dense<0.000000e+00> : vector<8xf32>
    %272 = vector.multi_reduction <add>, %271, %cst_104 [1] : vector<8x32xf32> to vector<8xf32>
    %273 = vector.shape_cast %272 : vector<8xf32> to vector<8x1xf32>
    %cst_105 = arith.constant 3.200000e+01 : f32
    %274 = vector.broadcast %cst_105 : f32 to vector<8x1xf32>
    %275 = arith.divf %273, %274 : vector<8x1xf32>
    %cst_106 = arith.constant 9.99999974E-6 : f32
    %276 = vector.broadcast %cst_106 : f32 to vector<8x1xf32>
    %277 = arith.addf %275, %276 : vector<8x1xf32>
    %278 = math.rsqrt %277 : vector<8x1xf32>
    %279 = vector.broadcast %278 : vector<8x1xf32> to vector<8x32xf32>
    %280 = arith.mulf %270, %279 : vector<8x32xf32>
    %281 = vector.broadcast %159 : vector<1x32xf32> to vector<8x32xf32>
    %282 = arith.mulf %280, %281 : vector<8x32xf32>
    %283 = vector.broadcast %161 : vector<1x32xf32> to vector<8x32xf32>
    %284 = arith.addf %282, %283 : vector<8x32xf32>
    %c576 = arith.constant 576 : index
    %c0_107 = arith.constant 0 : index
    %285 = vector.load %arg2[%c576, %c0_107] : memref<688x128xbf16, #tpu.memory_space<vmem>>, vector<32x64xbf16>
    %c608 = arith.constant 608 : index
    %c0_108 = arith.constant 0 : index
    %286 = vector.load %arg2[%c608, %c0_108] : memref<688x128xbf16, #tpu.memory_space<vmem>>, vector<64x32xbf16>
    %287 = arith.truncf %284 : vector<8x32xf32> to vector<8x32xbf16>
    %cst_109 = arith.constant dense<0.000000e+00> : vector<8x64xf32>
    %288 = tpu.matmul %287, %285, %cst_109 {dimension_numbers = #tpu.dot_dimension_numbers<[1], [0], [0], [1], [0, 0, 1, 1], [], []>} : vector<8x32xbf16>, vector<32x64xbf16>, vector<8x64xf32> -> vector<8x64xf32>
    %289 = vector.broadcast %165 : vector<1x64xf32> to vector<8x64xf32>
    %290 = arith.addf %288, %289 : vector<8x64xf32>
    %cst_110 = arith.constant 0.000000e+00 : f32
    %291 = vector.broadcast %cst_110 : f32 to vector<8x64xf32>
    %292 = arith.maximumf %290, %291 : vector<8x64xf32>
    %293 = arith.truncf %292 : vector<8x64xf32> to vector<8x64xbf16>
    %cst_111 = arith.constant dense<0.000000e+00> : vector<8x32xf32>
    %294 = tpu.matmul %293, %286, %cst_111 {dimension_numbers = #tpu.dot_dimension_numbers<[1], [0], [0], [1], [0, 0, 1, 1], [], []>} : vector<8x64xbf16>, vector<64x32xbf16>, vector<8x32xf32> -> vector<8x32xf32>
    %295 = arith.addf %284, %294 : vector<8x32xf32>
    %296 = vector.broadcast %167 : vector<1x32xf32> to vector<8x32xf32>
    %297 = arith.addf %295, %296 : vector<8x32xf32>
    %c0_112 = arith.constant 0 : index
    %c0_113 = arith.constant 0 : index
    %c0_114 = arith.constant 0 : index
    %298 = vector.load %arg3[%c0_112, %c0_113, %c0_114] : memref<1x8x32xf32, #tpu.memory_space<vmem>>, vector<1x8x32xf32>
    %299 = vector.shape_cast %298 : vector<1x8x32xf32> to vector<8x32xf32>
    %300 = vector.shape_cast %297 : vector<8x32xf32> to vector<1x8x32xf32>
    tpu.vector_store %arg3[%c0_112, %c0_113, %c0_114], %300 {strides = array<i32>} : memref<1x8x32xf32, #tpu.memory_space<vmem>>, vector<1x8x32xf32>,
    return
  }
  func.func @transform_0(%arg0: i32) -> (i32, i32, i32) {
    %c0_i32 = arith.constant 0 : i32
    %c0_i32_0 = arith.constant 0 : i32
    %c0_i32_1 = arith.constant 0 : i32
    return %arg0, %c0_i32, %c0_i32_0 : i32, i32, i32
  }
  func.func @transform_1(%arg0: i32) -> (i32, i32) {
    %c0_i32 = arith.constant 0 : i32
    %c0_i32_0 = arith.constant 0 : i32
    %c0_i32_1 = arith.constant 0 : i32
    return %c0_i32, %c0_i32_0 : i32, i32
  }
  func.func @transform_2(%arg0: i32) -> (i32, i32, i32) {
    %c0_i32 = arith.constant 0 : i32
    %c0_i32_0 = arith.constant 0 : i32
    %c0_i32_1 = arith.constant 0 : i32
    return %arg0, %c0_i32, %c0_i32_0 : i32, i32, i32
  }
}

</mosaic_0001>

<llo_original>
// kernel: transformer_forward.1
$region0: #{transformer_forward.1}
  #allocation0 [shape = 'u32[]', space=smem, size = 0x4, offset = 0x4, fixed_abs, tag = 'smem constant byte address 0x4 - core index']
  #allocation1 [shape = 'u32[144,128]{1,0:T(1,128)}', space=vmem, size = 0x12000, scoped, tag = 'internal scratch']
  %s0 = inlined_call_operand.hbm [shape: f32[2,8,32], index: 0, kind: input, shape index: {}]
  %s1 = inlined_call_operand.hbm [shape: bf16[688,128], index: 1, kind: input, shape index: {}]
  %s2 = inlined_call_operand.hbm [shape: f32[2,8,32], index: 2, kind: output, shape index: {}]
  %s3 = sld [smem:[#allocation0]]
  $region49: #{transformer_forward.1} parent=0
    _
  %s5 = ssub.s32 1, %s3
  %s6 = scalar_select 0, %s5, %s3
  $region1: #{transformer_forward.1} parent=0
    #allocation2 [shape = 'u8[8192]{0}', space=vmem, size = 0x2000, scoped, tag = 'input window, operand 0']
    #allocation3 [shape = 's32[2]{0}', space=sflag, size = 0x8, scoped, tag = 'scoped memory for transformer_forward.1']
    #allocation4 [shape = 's32[2]{0}', space=sflag, size = 0x8, scoped, tag = 'scoped memory for transformer_forward.1']
    #allocation5 [shape = 'u8[176128]{0}', space=vmem, size = 0x2b000, scoped, tag = 'input window, operand 1, single buffered']
    #allocation6 [shape = 's32[1]{0}', space=sflag, size = 0x4, scoped, tag = 'scoped memory for transformer_forward.1']
    #allocation7 [shape = 'u8[8192]{0}', space=vmem, size = 0x2000, scoped, tag = 'output window, operand 0']
    %7 = vsyncpa [#allocation3], 0
    %s8 = scalar_lea.sflag [#allocation3], 1
    %9 = vsyncpa %s8, 0
    %10 = vsyncpa [#allocation6], 0
    %11 = vsyncpa [#allocation4], 0
    %s12 = scalar_lea.sflag [#allocation4], 1
    %13 = vsyncpa %s12, 0
    loop: start=0, step=1, limit=4
    $region2: #{transformer_forward.1} parent=1 // loop_pre_header
      _
    $region3: #{transformer_forward.1} parent=1 // loop_header
      %s15 = sphi 0, %s19
      %p16 = scmp.ge.s32.totalorder %s15, 4
      %s25 = sphi 0, %s27
      %s28 = sphi 0, %s25
      %s29 = sphi 0, %s28
      %s45 = sphi 0, %s29
      %s49 = sphi 0, %s49
      %s51 = sphi 0, %s49
      %s52 = sphi 0, %s51
      %s66 = sphi 0, %s52
      %s72 = sphi 0, %s74
      %s75 = sphi 0, %s72
      %s76 = sphi 0, %s75
      %s92 = sphi 0, %s76
    $region4: #{transformer_forward.1} parent=1 // loop_header_branch
      %18 = sbr.rel (%p16) target = $region8
    $region5: #{transformer_forward.1} parent=1 // loop_body
      %s20 = ssub.s32 %s15, 1
      %s21 = ssub.s32 %s15, 2
      %s22 = sadd.s32 %s15, 1
      %s23 = ssub.s32 %s15, %s22
      %p24 = scmp.eq.s32.totalorder %s23, 0
      %s26 = sadd.s32 %s25, 1
      %s27 = scalar_select %p24, %s25, %s26
      %p30 = pneg %p24
      %p31 = scmp.eq.s32.totalorder %s15, 1
      %p32 = por %p30, %p31
      %p33 = scmp.ne.s32.totalorder %s25, %s28
      %p34 = scmp.eq.s32.totalorder %s15, 0
      %p35 = por %p33, %p34
      %p36 = scmp.ne.s32.totalorder %s25, %s28
      %p37 = scmp.eq.s32.totalorder %s20, 1
      %p38 = por %p36, %p37
      %p39 = scmp.ne.s32.totalorder %s28, %s29
      %p40 = scmp.eq.s32.totalorder %s20, 0
      %p41 = por %p39, %p40
      %p42 = scmp.ne.s32.totalorder %s28, %s29
      %p43 = scmp.eq.s32.totalorder %s21, 1
      %p44 = por %p42, %p43
      %p46 = scmp.ne.s32.totalorder %s29, %s45
      %p47 = scmp.eq.s32.totalorder %s21, 0
      %p48 = por %p46, %p47
      %s50 = sadd.s32 %s49, 1
      %p53 = scmp.eq.s32.totalorder %s15, 1
      %p54 = scmp.ne.s32.totalorder %s49, %s51
      %p55 = scmp.eq.s32.totalorder %s15, 0
      %p56 = por %p54, %p55
      %p57 = scmp.ne.s32.totalorder %s49, %s51
      %p58 = scmp.eq.s32.totalorder %s20, 1
      %p59 = por %p57, %p58
      %p60 = scmp.ne.s32.totalorder %s51, %s52
      %p61 = scmp.eq.s32.totalorder %s20, 0
      %p62 = por %p60, %p61
      %p63 = scmp.ne.s32.totalorder %s51, %s52
      %p64 = scmp.eq.s32.totalorder %s21, 1
      %p65 = por %p63, %p64
      %p67 = scmp.ne.s32.totalorder %s52, %s66
      %p68 = scmp.eq.s32.totalorder %s21, 0
      %p69 = por %p67, %p68
      %s70 = ssub.s32 %s15, %s22
      %p71 = scmp.eq.s32.totalorder %s70, 0
      %s73 = sadd.s32 %s72, 1
      %s74 = scalar_select %p71, %s72, %s73
      %p77 = pneg %p71
      %p78 = scmp.eq.s32.totalorder %s15, 1
      %p79 = por %p77, %p78
      %p80 = scmp.ne.s32.totalorder %s72, %s75
      %p81 = scmp.eq.s32.totalorder %s15, 0
      %p82 = por %p80, %p81
      %p83 = scmp.ne.s32.totalorder %s72, %s75
      %p84 = scmp.eq.s32.totalorder %s20, 1
      %p85 = por %p83, %p84
      %p86 = scmp.ne.s32.totalorder %s75, %s76
      %p87 = scmp.eq.s32.totalorder %s20, 0
      %p88 = por %p86, %p87
      %p89 = scmp.ne.s32.totalorder %s75, %s76
      %p90 = scmp.eq.s32.totalorder %s21, 1
      %p91 = por %p89, %p90
      %p93 = scmp.ne.s32.totalorder %s76, %s92
      %p94 = scmp.eq.s32.totalorder %s21, 0
      %p95 = por %p93, %p94
      %p96 = scmp.le.s32.totalorder 1, %s15
      %p97 = scmp.lt.s32.totalorder %s15, 3
      %p98 = pnand %p96, %p97
      %p99 = pneg %p98
      // Predicated region
      $region9: #{transformer_forward.1} parent=5 // pred_check
        _
      $region10: #{transformer_forward.1} parent=5 // pred_check_branch
        %101 = sbr.rel (%p98) target = $region12
      $region11: #{transformer_forward.1} parent=5 // pred_region
        %s102 = ssub.s32 %s15, 1
        // Predicated region
        $region13: #{transformer_forward.1} parent=11 // pred_check
          %p103 = pneg %p62
        $region14: #{transformer_forward.1} parent=11 // pred_check_branch
          %105 = sbr.rel (%p103) target = $region16
        $region15: #{transformer_forward.1} parent=11 // pred_region
          %s107 = ssub.s32 5504, 5504
          %108 = vsyncadd [#allocation6], %s107
          %s109 = sshll.u32 [#allocation5], 4
          %s110 = int_to_ptr.vmem [resolvable:$true] %s109
          %115 = dma.hbm_to_vmem [thread:$0]  %s1, 5504, %s110, [#allocation6], 64, 64, 4
        $region16: #{transformer_forward.1} parent=11 // pred_fallthru
          _
      $region12: #{transformer_forward.1} parent=5 // pred_fallthru
        _
      %p116 = scmp.lt.s32.totalorder %s15, 2
      // Predicated region
      $region17: #{transformer_forward.1} parent=5 // pred_check
        %p117 = pneg %p116
      $region18: #{transformer_forward.1} parent=5 // pred_check_branch
        %119 = sbr.rel (%p117) target = $region20
      $region19: #{transformer_forward.1} parent=5 // pred_region
        // Predicated region
        $region21: #{transformer_forward.1} parent=19 // pred_check
          %p120 = pneg %p35
        $region22: #{transformer_forward.1} parent=19 // pred_check_branch
          %122 = sbr.rel (%p120) target = $region24
        $region23: #{transformer_forward.1} parent=19 // pred_region
          %s123 = sand.u32 %s25, 1
          %s124 = scalar_lea.sflag [#allocation3], %s123
          %s125 = sand.u32 %s25, 1
          %s126 = smul.addr %s125, 8
          %s127 = scalar_lea.vmem [#allocation2], %s126
          %s129 = ssub.s32 128, 128
          %130 = vsyncadd %s124, %s129
          %s131 = smul.addr %s15, 128
          %s132 = scalar_lea.hbm %s0, %s131
          %s134 = sshll.u32 %s127, 4
          %s135 = int_to_ptr.vmem [resolvable:$true] %s134
          %137 = dma.hbm_to_vmem [thread:$0]  %s132, 128, %s135, %s124
        $region24: #{transformer_forward.1} parent=19 // pred_fallthru
          _
      $region20: #{transformer_forward.1} parent=5 // pred_fallthru
        _
      %p138 = scmp.le.s32.totalorder 1, %s15
      %p139 = scmp.lt.s32.totalorder %s15, 3
      %p140 = pnand %p138, %p139
      %p141 = pneg %p140
      // Predicated region
      $region25: #{transformer_forward.1} parent=5 // pred_check
        _
      $region26: #{transformer_forward.1} parent=5 // pred_check_branch
        %143 = sbr.rel (%p140) target = $region28
      $region27: #{transformer_forward.1} parent=5 // pred_region
        %s144 = ssub.s32 %s15, 1
        %s145 = sand.u32 %s28, 1
        %s146 = scalar_lea.sflag [#allocation3], %s145
        %s147 = sand.u32 %s28, 1
        %s148 = smul.addr %s147, 8
        %s149 = scalar_lea.vmem [#allocation2], %s148
        // Predicated region
        $region29: #{transformer_forward.1} parent=27 // pred_check
          %p150 = pneg %p41
        $region30: #{transformer_forward.1} parent=27 // pred_check_branch
          %152 = sbr.rel (%p150) target = $region32
        $region31: #{transformer_forward.1} parent=27 // pred_region
          %153 = dma.done %s146, 128
        $region32: #{transformer_forward.1} parent=27 // pred_fallthru
          _
        // Predicated region
        $region33: #{transformer_forward.1} parent=27 // pred_check
          %p154 = pneg %p62
        $region34: #{transformer_forward.1} parent=27 // pred_check_branch
          %156 = sbr.rel (%p154) target = $region36
        $region35: #{transformer_forward.1} parent=27 // pred_region
          %157 = dma.done [#allocation6], 5504
        $region36: #{transformer_forward.1} parent=27 // pred_fallthru
          _
        %s158 = sand.u32 %s28, 1
        %s159 = scalar_lea.sflag [#allocation3], %s158
        %s160 = sand.u32 %s28, 1
        %s161 = smul.addr %s160, 8
        %s162 = scalar_lea.vmem [#allocation2], %s161
        %p163 = pneg %p41
        %p164 = pneg %p38
        %p165 = pneg %p62
        %p166 = pneg %p59
        %p167 = pneg %p88
        %p168 = pneg %p85
        %s169 = sand.u32 %s75, 1
        %s170 = scalar_lea.sflag [#allocation4], %s169
        %s171 = sand.u32 %s75, 1
        %s172 = smul.addr %s171, 8
        %s173 = scalar_lea.vmem [#allocation7], %s172
        %v175 = vlaneseq
        %v176 = vshrl.u32 %v175, 7
        %v177 = vlaneseq
        %v178 = vand.u32 %v177, 127
        %vm179 = vcmp.le.s32.totalorder %v178, %v176
        %v180 = vld [vmem:[#allocation5] sm:$0xf]
        %v181 = vunpack.c.l.bf16 %v180
        %v182 = vld [vmem:[%s149] sm:$0xff]
        %v183 = vmul.f32 %v182, 5.656854
        %v184 = vadd.f32 %v183, %v181
        %v185 = vld [vmem:[#allocation5 + $0xa8] sm:$0x1]
        %v186 = vunpack.c.l.bf16 %v185
        %v187 = vld [vmem:[#allocation5 + $0xac] sm:$0x1]
        %v188 = vunpack.c.l.bf16 %v187
        %v189 = vld [vmem:[#allocation5 + $0xac] sm:$0x2]
        %v190 = vunpack.c.l.bf16 %v189
        %v191 = vld [vmem:[#allocation5 + $0xac] sm:$0x4]
        %v192 = vunpack.c.l.bf16 %v191
        %vm193 = vcmask 261120
        %v194 = vsel %vm193, %v184, 0.0
        %195 = vadd.xlane.f32.xlu0 %v194
        %v196 = vpop.xlane.xlu0 %195
        %v197 = vrcp.pop 32.0
        %v198 = vmul.f32 %v196, %v197
        %v199 = vsub.f32 %v184, %v198
        %v200 = vmul.f32 %v199, %v199
        %v201 = vsel %vm193, %v200, 0.0
        %202 = vadd.xlane.f32.xlu0 %v201
        %v203 = vpop.xlane.xlu0 %202
        %v204 = vmul.f32 %v203, %v197
        %v205 = vadd.f32 %v204, 1e-05
        %v206 = vrsqrt.pop %v205
        %v207 = vmul.f32 %v199, %v206
        %v208 = vlaneseq
        %v209 = vshrl.u32 %v208, 7
        %v210 = vsub.s32 0, %v209
        %v211 = vrot.slane %v186, %v210
        %v212 = vmul.f32 %v207, %v211
        %v213 = vlaneseq
        %v214 = vshrl.u32 %v213, 7
        %v215 = vsub.s32 1, %v214
        %v216 = vrot.slane %v186, %v215
        %v217 = vadd.f32 %v212, %v216
        %v218 = vpack.c.bf16 %v217, %v217
        %v219 = vpack.c.bf16 %v184, %v184
        %v220 = vlaneseq
        %v221 = vshrl.u32 %v220, 7
        %v222 = vsub.s32 0, %v221
        %v223 = vrot.slane %v188, %v222
        %v224 = vld [vmem:[#allocation5 + $0x8] sm:$0xf]
        %v225 = vld [vmem:[#allocation5 + $0xc] sm:$0xf]
        %v226 = vld [vmem:[#allocation5 + $0x10] sm:$0xf]
        %v227 = vld [vmem:[#allocation5 + $0x14] sm:$0xf]
        %v228 = vld [vmem:[#allocation5 + $0x28] sm:$0xf]
        %v229 = vld [vmem:[#allocation5 + $0x2c] sm:$0xf]
        %v230 = vld [vmem:[#allocation5 + $0x30] sm:$0xf]
        %v231 = vld [vmem:[#allocation5 + $0x34] sm:$0xf]
        %v232 = vld [vmem:[#allocation5 + $0x48] sm:$0xf]
        %v233 = vld [vmem:[#allocation5 + $0x4c] sm:$0xf]
        %v234 = vld [vmem:[#allocation5 + $0x50] sm:$0xf]
        %v235 = vld [vmem:[#allocation5 + $0x54] sm:$0xf]
        %v236 = vld [vmem:[#allocation5 + $0xa8] sm:$0x2]
        %v237 = vunpack.c.l.bf16 %v236
        %v238 = vld [vmem:[#allocation5 + $0xa8] sm:$0x4]
        %v239 = vunpack.c.l.bf16 %v238
        %v240 = vld [vmem:[#allocation5 + $0xa8] sm:$0x8]
        %v241 = vunpack.c.l.bf16 %v240
        %v242 = vlaneseq
        %v243 = vshrl.u32 %v242, 7
        %v244 = vsub.s32 2, %v243
        %v245 = vrot.slane %v237, %v244
        %v250 = vunpack.c.l.b16 %v224
        %v251 = vunpack.c.l.b16 %v225
        %v252 = vunpack.c.l.b16 %v226
        %v253 = vunpack.c.l.b16 %v227
        %v254 = vpack.c.b16 %v251, %v250
        %v255 = vpack.c.b16 %v253, %v252
        %v259 = vsel %vm193, %v218, 0
        %261 = vmatprep.subr.bf16.mxu0 0
        %262 = vmatpush1.bf16.msra.mxu0 0
        %263 = vmatprep.subr.bf16.mxu0 0
        %264 = vmatpush1.bf16.msra.mxu0 0
        %265 = vmatprep.subr.bf16.mxu0 0
        %266 = vmatpush1.bf16.msra.mxu0 0
        %267 = vmatprep.subr.bf16.mxu0 0
        %268 = vmatpush1.bf16.msra.mxu0 0
        %269 = vmatprep.subr.bf16.mxu0 0
        %270 = vmatpush1.bf16.msra.mxu0 0
        %271 = vmatprep.subr.bf16.mxu0 0
        %272 = vmatpush1.bf16.msra.mxu0 0
        %273 = vmatprep.subr.bf16.mxu0 0
        %274 = vmatpush1.bf16.msra.mxu0 %v255
        %275 = vmatprep.subr.bf16.mxu0 0
        %276 = vmatpush1.bf16.msra.mxu0 %v254
        %277 = vmatprep.subr.bf16.mxu0 0
        %278 = vmatpush2.bf16.msra.mxu0 0
        %279 = vmatprep.subr.bf16.mxu0 0
        %280 = vmatpush2.bf16.msra.mxu0 0
        %281 = vmatprep.subr.bf16.mxu0 0
        %282 = vmatpush2.bf16.msra.mxu0 0
        %283 = vmatprep.subr.bf16.mxu0 0
        %284 = vmatpush2.bf16.msra.mxu0 0
        %285 = vmatprep.subr.bf16.mxu0 0
        %286 = vmatpush2.bf16.msra.mxu0 0
        %287 = vmatprep.subr.bf16.mxu0 0
        %288 = vmatpush2.bf16.msra.mxu0 0
        %289 = vmatprep.subr.bf16.mxu0 0
        %290 = vmatpush2.bf16.msra.mxu0 0
        %291 = vmatprep.subr.bf16.mxu0 0
        %292 = vmatpush2.bf16.msra.mxu0 0
        %293 = vmatprep.mubr.bf16.mxu0 0
        %294 = vmatmul.mubr.bf16.gmra.mxu0 %v259
        %v295 = vpop.f32.mrf.mxu0
        %v296 = vadd.f32 %v245, %v295
        %v297 = vpop.f32.mrf.mxu0
        %v298 = vpop.f32.mrf.mxu0
        %v299 = vpop.f32.mrf.mxu0
        %300 = vdwg.mxu0
        %v301 = vlaneseq
        %v302 = vshrl.u32 %v301, 7
        %v303 = vsub.s32 4, %v302
        %v304 = vrot.slane %v239, %v303
        %v309 = vunpack.c.l.b16 %v228
        %v310 = vunpack.c.l.b16 %v229
        %v311 = vunpack.c.l.b16 %v230
        %v312 = vunpack.c.l.b16 %v231
        %v313 = vpack.c.b16 %v310, %v309
        %v314 = vpack.c.b16 %v312, %v311
        %v318 = vsel %vm193, %v219, 0
        %320 = vmatprep.subr.bf16.mxu0 0
        %321 = vmatpush1.bf16.msra.mxu0 0
        %322 = vmatprep.subr.bf16.mxu0 0
        %323 = vmatpush1.bf16.msra.mxu0 0
        %324 = vmatprep.subr.bf16.mxu0 0
        %325 = vmatpush1.bf16.msra.mxu0 0
        %326 = vmatprep.subr.bf16.mxu0 0
        %327 = vmatpush1.bf16.msra.mxu0 0
        %328 = vmatprep.subr.bf16.mxu0 0
        %329 = vmatpush1.bf16.msra.mxu0 0
        %330 = vmatprep.subr.bf16.mxu0 0
        %331 = vmatpush1.bf16.msra.mxu0 0
        %332 = vmatprep.subr.bf16.mxu0 0
        %333 = vmatpush1.bf16.msra.mxu0 %v314
        %334 = vmatprep.subr.bf16.mxu0 0
        %335 = vmatpush1.bf16.msra.mxu0 %v313
        %336 = vmatprep.subr.bf16.mxu0 0
        %337 = vmatpush2.bf16.msra.mxu0 0
        %338 = vmatprep.subr.bf16.mxu0 0
        %339 = vmatpush2.bf16.msra.mxu0 0
        %340 = vmatprep.subr.bf16.mxu0 0
        %341 = vmatpush2.bf16.msra.mxu0 0
        %342 = vmatprep.subr.bf16.mxu0 0
        %343 = vmatpush2.bf16.msra.mxu0 0
        %344 = vmatprep.subr.bf16.mxu0 0
        %345 = vmatpush2.bf16.msra.mxu0 0
        %346 = vmatprep.subr.bf16.mxu0 0
        %347 = vmatpush2.bf16.msra.mxu0 0
        %348 = vmatprep.subr.bf16.mxu0 0
        %349 = vmatpush2.bf16.msra.mxu0 0
        %350 = vmatprep.subr.bf16.mxu0 0
        %351 = vmatpush2.bf16.msra.mxu0 0
        %352 = vmatprep.mubr.bf16.mxu0 0
        %353 = vmatmul.mubr.bf16.gmra.mxu0 %v318
        %v354 = vpop.f32.mrf.mxu0
        %v355 = vadd.f32 %v304, %v354
        %v356 = vpop.f32.mrf.mxu0
        %v357 = vpop.f32.mrf.mxu0
        %v358 = vpop.f32.mrf.mxu0
        %359 = vdwg.mxu0
        %v360 = vlaneseq
        %v361 = vshrl.u32 %v360, 7
        %v362 = vsub.s32 6, %v361
        %v363 = vrot.slane %v241, %v362
        %v368 = vunpack.c.l.b16 %v232
        %v369 = vunpack.c.l.b16 %v233
        %v370 = vunpack.c.l.b16 %v234
        %v371 = vunpack.c.l.b16 %v235
        %v372 = vpack.c.b16 %v369, %v368
        %v373 = vpack.c.b16 %v371, %v370
        %376 = vmatprep.subr.bf16.mxu0 0
        %377 = vmatpush1.bf16.msra.mxu0 0
        %378 = vmatprep.subr.bf16.mxu0 0
        %379 = vmatpush1.bf16.msra.mxu0 0
        %380 = vmatprep.subr.bf16.mxu0 0
        %381 = vmatpush1.bf16.msra.mxu0 0
        %382 = vmatprep.subr.bf16.mxu0 0
        %383 = vmatpush1.bf16.msra.mxu0 0
        %384 = vmatprep.subr.bf16.mxu0 0
        %385 = vmatpush1.bf16.msra.mxu0 0
        %386 = vmatprep.subr.bf16.mxu0 0
        %387 = vmatpush1.bf16.msra.mxu0 0
        %388 = vmatprep.subr.bf16.mxu0 0
        %389 = vmatpush1.bf16.msra.mxu0 %v373
        %390 = vmatprep.subr.bf16.mxu0 0
        %391 = vmatpush1.bf16.msra.mxu0 %v372
        %392 = vmatprep.subr.bf16.mxu0 0
        %393 = vmatpush2.bf16.msra.mxu0 0
        %394 = vmatprep.subr.bf16.mxu0 0
        %395 = vmatpush2.bf16.msra.mxu0 0
        %396 = vmatprep.subr.bf16.mxu0 0
        %397 = vmatpush2.bf16.msra.mxu0 0
        %398 = vmatprep.subr.bf16.mxu0 0
        %399 = vmatpush2.bf16.msra.mxu0 0
        %400 = vmatprep.subr.bf16.mxu0 0
        %401 = vmatpush2.bf16.msra.mxu0 0
        %402 = vmatprep.subr.bf16.mxu0 0
        %403 = vmatpush2.bf16.msra.mxu0 0
        %404 = vmatprep.subr.bf16.mxu0 0
        %405 = vmatpush2.bf16.msra.mxu0 0
        %406 = vmatprep.subr.bf16.mxu0 0
        %407 = vmatpush2.bf16.msra.mxu0 0
        %408 = vmatprep.mubr.bf16.mxu0 0
        %409 = vmatmul.mubr.bf16.gmra.mxu0 %v318
        %v410 = vpop.f32.mrf.mxu0
        %v411 = vadd.f32 %v363, %v410
        %v412 = vpop.f32.mrf.mxu0
        %v413 = vpop.f32.mrf.mxu0
        %v414 = vpop.f32.mrf.mxu0
        %415 = vdwg.mxu0
        %vm416 = vcmask 130048
        %v418 = vsel %vm416, %v296, 0
        %v421 = vsel %vm416, %v355, 0
        %423 = vmatprep.subr.mxu0 0.0
        %424 = vmatpush1.xpose.msra.mxu0 0.0
        %425 = vmatprep.subr.mxu0 0.0
        %426 = vmatpush1.xpose.msra.mxu0 0.0
        %427 = vmatprep.subr.mxu0 0.0
        %428 = vmatpush1.xpose.msra.mxu0 0.0
        %429 = vmatprep.subr.mxu0 0.0
        %430 = vmatpush1.xpose.msra.mxu0 0.0
        %431 = vmatprep.subr.mxu0 0.0
        %432 = vmatpush1.xpose.msra.mxu0 0.0
        %433 = vmatprep.subr.mxu0 0.0
        %434 = vmatpush1.xpose.msra.mxu0 0.0
        %435 = vmatprep.subr.mxu0 0.0
        %436 = vmatpush1.xpose.msra.mxu0 0.0
        %437 = vmatprep.subr.mxu0 0.0
        %438 = vmatpush1.xpose.msra.mxu0 0.0
        %439 = vmatprep.subr.mxu0 0.0
        %440 = vmatpush1.xpose.msra.mxu0 0.0
        %441 = vmatprep.subr.mxu0 0.0
        %442 = vmatpush1.xpose.msra.mxu0 0.0
        %443 = vmatprep.subr.mxu0 0.0
        %444 = vmatpush1.xpose.msra.mxu0 0.0
        %445 = vmatprep.subr.mxu0 0.0
        %446 = vmatpush1.xpose.msra.mxu0 0.0
        %447 = vmatprep.subr.mxu0 0.0
        %448 = vmatpush1.xpose.msra.mxu0 0.0
        %449 = vmatprep.subr.mxu0 0.0
        %450 = vmatpush1.xpose.msra.mxu0 0.0
        %451 = vmatprep.subr.mxu0 0.0
        %452 = vmatpush1.xpose.msra.mxu0 0.0
        %453 = vmatprep.subr.mxu0 0.0
        %454 = vmatpush1.xpose.msra.mxu0 %v421
        %455 = vmatprep.subr.mxu0 0.0
        %456 = vmatpush2.xpose.msra.mxu0 0.0
        %457 = vmatprep.subr.mxu0 0.0
        %458 = vmatpush2.xpose.msra.mxu0 0.0
        %459 = vmatprep.subr.mxu0 0.0
        %460 = vmatpush2.xpose.msra.mxu0 0.0
        %461 = vmatprep.subr.mxu0 0.0
        %462 = vmatpush2.xpose.msra.mxu0 0.0
        %463 = vmatprep.subr.mxu0 0.0
        %464 = vmatpush2.xpose.msra.mxu0 0.0
        %465 = vmatprep.subr.mxu0 0.0
        %466 = vmatpush2.xpose.msra.mxu0 0.0
        %467 = vmatprep.subr.mxu0 0.0
        %468 = vmatpush2.xpose.msra.mxu0 0.0
        %469 = vmatprep.subr.mxu0 0.0
        %470 = vmatpush2.xpose.msra.mxu0 0.0
        %471 = vmatprep.subr.mxu0 0.0
        %472 = vmatpush2.xpose.msra.mxu0 0.0
        %473 = vmatprep.subr.mxu0 0.0
        %474 = vmatpush2.xpose.msra.mxu0 0.0
        %475 = vmatprep.subr.mxu0 0.0
        %476 = vmatpush2.xpose.msra.mxu0 0.0
        %477 = vmatprep.subr.mxu0 0.0
        %478 = vmatpush2.xpose.msra.mxu0 0.0
        %479 = vmatprep.subr.mxu0 0.0
        %480 = vmatpush2.xpose.msra.mxu0 0.0
        %481 = vmatprep.subr.mxu0 0.0
        %482 = vmatpush2.xpose.msra.mxu0 0.0
        %483 = vmatprep.subr.mxu0 0.0
        %484 = vmatpush2.xpose.msra.mxu0 0.0
        %485 = vmatprep.subr.mxu0 0.0
        %486 = vmatpush2.xpose.msra.mxu0 0.0
        %487 = vmatprep.mubr.f32.mxu0 0.0
        %488 = vmatmul.mubr.f32.gmra.mxu0 %v418
        %v489 = vpop.f32.mrf.mxu0
        %v490 = vadd.f32 0.0, %v489
        %v491 = vpop.f32.mrf.mxu0
        %492 = vdwg.mxu0
        %v493 = vsel %vm179, %v490, -1e+30
        %vm494 = vcmask 64512
        %v495 = vsel %vm494, %v493, -inf
        %496 = vmax.xlane.f32.xlu0 %v495
        %v497 = vpop.xlane.xlu0 %496
        %v498 = vsub.f32 %v493, %v497
        %v499 = vmul.f32 %v498, 1.442695
        %v500 = vpow.pop %v499
        %v501 = vsel %vm494, %v500, 0.0
        %502 = vadd.xlane.f32.xlu0 %v501
        %v503 = vpop.xlane.xlu0 %502
        %v504 = vrcp.pop %v503
        %v505 = vmul.f32 %v500, %v504
        %v507 = vsel %vm494, %v505, 0
        %509 = vmatprep.subr.mxu0 0.0
        %510 = vmatpush1.msra.mxu0 0.0
        %511 = vmatprep.subr.mxu0 0.0
        %512 = vmatpush1.msra.mxu0 0.0
        %513 = vmatprep.subr.mxu0 0.0
        %514 = vmatpush1.msra.mxu0 0.0
        %515 = vmatprep.subr.mxu0 0.0
        %516 = vmatpush1.msra.mxu0 0.0
        %517 = vmatprep.subr.mxu0 0.0
        %518 = vmatpush1.msra.mxu0 0.0
        %519 = vmatprep.subr.mxu0 0.0
        %520 = vmatpush1.msra.mxu0 0.0
        %521 = vmatprep.subr.mxu0 0.0
        %522 = vmatpush1.msra.mxu0 0.0
        %523 = vmatprep.subr.mxu0 0.0
        %524 = vmatpush1.msra.mxu0 0.0
        %525 = vmatprep.subr.mxu0 0.0
        %526 = vmatpush1.msra.mxu0 0.0
        %527 = vmatprep.subr.mxu0 0.0
        %528 = vmatpush1.msra.mxu0 0.0
        %529 = vmatprep.subr.mxu0 0.0
        %530 = vmatpush1.msra.mxu0 0.0
        %531 = vmatprep.subr.mxu0 0.0
        %532 = vmatpush1.msra.mxu0 0.0
        %533 = vmatprep.subr.mxu0 0.0
        %534 = vmatpush1.msra.mxu0 0.0
        %535 = vmatprep.subr.mxu0 0.0
        %536 = vmatpush1.msra.mxu0 0.0
        %537 = vmatprep.subr.mxu0 0.0
        %538 = vmatpush1.msra.mxu0 0.0
        %539 = vmatprep.subr.mxu0 0.0
        %540 = vmatpush1.msra.mxu0 %v411
        %541 = vmatprep.subr.mxu0 0.0
        %542 = vmatpush2.msra.mxu0 0.0
        %543 = vmatprep.subr.mxu0 0.0
        %544 = vmatpush2.msra.mxu0 0.0
        %545 = vmatprep.subr.mxu0 0.0
        %546 = vmatpush2.msra.mxu0 0.0
        %547 = vmatprep.subr.mxu0 0.0
        %548 = vmatpush2.msra.mxu0 0.0
        %549 = vmatprep.subr.mxu0 0.0
        %550 = vmatpush2.msra.mxu0 0.0
        %551 = vmatprep.subr.mxu0 0.0
        %552 = vmatpush2.msra.mxu0 0.0
        %553 = vmatprep.subr.mxu0 0.0
        %554 = vmatpush2.msra.mxu0 0.0
        %555 = vmatprep.subr.mxu0 0.0
        %556 = vmatpush2.msra.mxu0 0.0
        %557 = vmatprep.subr.mxu0 0.0
        %558 = vmatpush2.msra.mxu0 0.0
        %559 = vmatprep.subr.mxu0 0.0
        %560 = vmatpush2.msra.mxu0 0.0
        %561 = vmatprep.subr.mxu0 0.0
        %562 = vmatpush2.msra.mxu0 0.0
        %563 = vmatprep.subr.mxu0 0.0
        %564 = vmatpush2.msra.mxu0 0.0
        %565 = vmatprep.subr.mxu0 0.0
        %566 = vmatpush2.msra.mxu0 0.0
        %567 = vmatprep.subr.mxu0 0.0
        %568 = vmatpush2.msra.mxu0 0.0
        %569 = vmatprep.subr.mxu0 0.0
        %570 = vmatpush2.msra.mxu0 0.0
        %571 = vmatprep.subr.mxu0 0.0
        %572 = vmatpush2.msra.mxu0 0.0
        %573 = vmatprep.mubr.f32.mxu0 0.0
        %574 = vmatmul.mubr.f32.gmra.mxu0 %v507
        %v575 = vpop.f32.mrf.mxu0
        %v576 = vadd.f32 0.0, %v575
        %v577 = vpop.f32.mrf.mxu0
        %578 = vdwg.mxu0
        %v579 = vld [vmem:[#allocation5 + $0x68] sm:$0xf]
        %v580 = vld [vmem:[#allocation5 + $0x6c] sm:$0xf]
        %v581 = vpack.c.bf16 %v576, %v576
        %v584 = vunpack.c.l.b16 %v579
        %v585 = vunpack.c.l.b16 %v580
        %v586 = vpack.c.b16 %v585, %v584
        %v589 = vsel %vm416, %v581, 0
        %591 = vmatprep.subr.bf16.mxu0 0
        %592 = vmatpush1.bf16.msra.mxu0 0
        %593 = vmatprep.subr.bf16.mxu0 0
        %594 = vmatpush1.bf16.msra.mxu0 0
        %595 = vmatprep.subr.bf16.mxu0 0
        %596 = vmatpush1.bf16.msra.mxu0 0
        %597 = vmatprep.subr.bf16.mxu0 0
        %598 = vmatpush1.bf16.msra.mxu0 0
        %599 = vmatprep.subr.bf16.mxu0 0
        %600 = vmatpush1.bf16.msra.mxu0 0
        %601 = vmatprep.subr.bf16.mxu0 0
        %602 = vmatpush1.bf16.msra.mxu0 0
        %603 = vmatprep.subr.bf16.mxu0 0
        %604 = vmatpush1.bf16.msra.mxu0 0
        %605 = vmatprep.subr.bf16.mxu0 0
        %606 = vmatpush1.bf16.msra.mxu0 %v586
        %607 = vmatprep.subr.bf16.mxu0 0
        %608 = vmatpush2.bf16.msra.mxu0 0
        %609 = vmatprep.subr.bf16.mxu0 0
        %610 = vmatpush2.bf16.msra.mxu0 0
        %611 = vmatprep.subr.bf16.mxu0 0
        %612 = vmatpush2.bf16.msra.mxu0 0
        %613 = vmatprep.subr.bf16.mxu0 0
        %614 = vmatpush2.bf16.msra.mxu0 0
        %615 = vmatprep.subr.bf16.mxu0 0
        %616 = vmatpush2.bf16.msra.mxu0 0
        %617 = vmatprep.subr.bf16.mxu0 0
        %618 = vmatpush2.bf16.msra.mxu0 0
        %619 = vmatprep.subr.bf16.mxu0 0
        %620 = vmatpush2.bf16.msra.mxu0 0
        %621 = vmatprep.subr.bf16.mxu0 0
        %622 = vmatpush2.bf16.msra.mxu0 0
        %623 = vmatprep.mubr.bf16.mxu0 0
        %624 = vmatmul.mubr.bf16.gmra.mxu0 %v589
        %v625 = vpop.f32.mrf.mxu0
        %v626 = vadd.f32 0.0, %v625
        %v627 = vpop.f32.mrf.mxu0
        %v628 = vpop.f32.mrf.mxu0
        %v629 = vpop.f32.mrf.mxu0
        %630 = vdwg.mxu0
        %v631 = vadd.f32 %v223, %v626
        %v632 = vld [vmem:[#allocation5 + $0x18] sm:$0xf]
        %v633 = vld [vmem:[#allocation5 + $0x1c] sm:$0xf]
        %v634 = vld [vmem:[#allocation5 + $0x20] sm:$0xf]
        %v635 = vld [vmem:[#allocation5 + $0x24] sm:$0xf]
        %v636 = vld [vmem:[#allocation5 + $0x38] sm:$0xf]
        %v637 = vld [vmem:[#allocation5 + $0x3c] sm:$0xf]
        %v638 = vld [vmem:[#allocation5 + $0x40] sm:$0xf]
        %v639 = vld [vmem:[#allocation5 + $0x44] sm:$0xf]
        %v640 = vld [vmem:[#allocation5 + $0x58] sm:$0xf]
        %v641 = vld [vmem:[#allocation5 + $0x5c] sm:$0xf]
        %v642 = vld [vmem:[#allocation5 + $0x60] sm:$0xf]
        %v643 = vld [vmem:[#allocation5 + $0x64] sm:$0xf]
        %v644 = vlaneseq
        %v645 = vshrl.u32 %v644, 7
        %v646 = vsub.s32 3, %v645
        %v647 = vrot.slane %v237, %v646
        %v652 = vunpack.c.l.b16 %v632
        %v653 = vunpack.c.l.b16 %v633
        %v654 = vunpack.c.l.b16 %v634
        %v655 = vunpack.c.l.b16 %v635
        %v656 = vpack.c.b16 %v653, %v652
        %v657 = vpack.c.b16 %v655, %v654
        %660 = vmatprep.subr.bf16.mxu0 0
        %661 = vmatpush1.bf16.msra.mxu0 0
        %662 = vmatprep.subr.bf16.mxu0 0
        %663 = vmatpush1.bf16.msra.mxu0 0
        %664 = vmatprep.subr.bf16.mxu0 0
        %665 = vmatpush1.bf16.msra.mxu0 0
        %666 = vmatprep.subr.bf16.mxu0 0
        %667 = vmatpush1.bf16.msra.mxu0 0
        %668 = vmatprep.subr.bf16.mxu0 0
        %669 = vmatpush1.bf16.msra.mxu0 0
        %670 = vmatprep.subr.bf16.mxu0 0
        %671 = vmatpush1.bf16.msra.mxu0 0
        %672 = vmatprep.subr.bf16.mxu0 0
        %673 = vmatpush1.bf16.msra.mxu0 %v657
        %674 = vmatprep.subr.bf16.mxu0 0
        %675 = vmatpush1.bf16.msra.mxu0 %v656
        %676 = vmatprep.subr.bf16.mxu0 0
        %677 = vmatpush2.bf16.msra.mxu0 0
        %678 = vmatprep.subr.bf16.mxu0 0
        %679 = vmatpush2.bf16.msra.mxu0 0
        %680 = vmatprep.subr.bf16.mxu0 0
        %681 = vmatpush2.bf16.msra.mxu0 0
        %682 = vmatprep.subr.bf16.mxu0 0
        %683 = vmatpush2.bf16.msra.mxu0 0
        %684 = vmatprep.subr.bf16.mxu0 0
        %685 = vmatpush2.bf16.msra.mxu0 0
        %686 = vmatprep.subr.bf16.mxu0 0
        %687 = vmatpush2.bf16.msra.mxu0 0
        %688 = vmatprep.subr.bf16.mxu0 0
        %689 = vmatpush2.bf16.msra.mxu0 0
        %690 = vmatprep.subr.bf16.mxu0 0
        %691 = vmatpush2.bf16.msra.mxu0 0
        %692 = vmatprep.mubr.bf16.mxu0 0
        %693 = vmatmul.mubr.bf16.gmra.mxu0 %v259
        %v694 = vpop.f32.mrf.mxu0
        %v695 = vadd.f32 %v647, %v694
        %v696 = vpop.f32.mrf.mxu0
        %v697 = vpop.f32.mrf.mxu0
        %v698 = vpop.f32.mrf.mxu0
        %699 = vdwg.mxu0
        %v700 = vlaneseq
        %v701 = vshrl.u32 %v700, 7
        %v702 = vsub.s32 5, %v701
        %v703 = vrot.slane %v239, %v702
        %v708 = vunpack.c.l.b16 %v636
        %v709 = vunpack.c.l.b16 %v637
        %v710 = vunpack.c.l.b16 %v638
        %v711 = vunpack.c.l.b16 %v639
        %v712 = vpack.c.b16 %v709, %v708
        %v713 = vpack.c.b16 %v711, %v710
        %716 = vmatprep.subr.bf16.mxu0 0
        %717 = vmatpush1.bf16.msra.mxu0 0
        %718 = vmatprep.subr.bf16.mxu0 0
        %719 = vmatpush1.bf16.msra.mxu0 0
        %720 = vmatprep.subr.bf16.mxu0 0
        %721 = vmatpush1.bf16.msra.mxu0 0
        %722 = vmatprep.subr.bf16.mxu0 0
        %723 = vmatpush1.bf16.msra.mxu0 0
        %724 = vmatprep.subr.bf16.mxu0 0
        %725 = vmatpush1.bf16.msra.mxu0 0
        %726 = vmatprep.subr.bf16.mxu0 0
        %727 = vmatpush1.bf16.msra.mxu0 0
        %728 = vmatprep.subr.bf16.mxu0 0
        %729 = vmatpush1.bf16.msra.mxu0 %v713
        %730 = vmatprep.subr.bf16.mxu0 0
        %731 = vmatpush1.bf16.msra.mxu0 %v712
        %732 = vmatprep.subr.bf16.mxu0 0
        %733 = vmatpush2.bf16.msra.mxu0 0
        %734 = vmatprep.subr.bf16.mxu0 0
        %735 = vmatpush2.bf16.msra.mxu0 0
        %736 = vmatprep.subr.bf16.mxu0 0
        %737 = vmatpush2.bf16.msra.mxu0 0
        %738 = vmatprep.subr.bf16.mxu0 0
        %739 = vmatpush2.bf16.msra.mxu0 0
        %740 = vmatprep.subr.bf16.mxu0 0
        %741 = vmatpush2.bf16.msra.mxu0 0
        %742 = vmatprep.subr.bf16.mxu0 0
        %743 = vmatpush2.bf16.msra.mxu0 0
        %744 = vmatprep.subr.bf16.mxu0 0
        %745 = vmatpush2.bf16.msra.mxu0 0
        %746 = vmatprep.subr.bf16.mxu0 0
        %747 = vmatpush2.bf16.msra.mxu0 0
        %748 = vmatprep.mubr.bf16.mxu0 0
        %749 = vmatmul.mubr.bf16.gmra.mxu0 %v318
        %v750 = vpop.f32.mrf.mxu0
        %v751 = vadd.f32 %v703, %v750
        %v752 = vpop.f32.mrf.mxu0
        %v753 = vpop.f32.mrf.mxu0
        %v754 = vpop.f32.mrf.mxu0
        %755 = vdwg.mxu0
        %v756 = vlaneseq
        %v757 = vshrl.u32 %v756, 7
        %v758 = vsub.s32 7, %v757
        %v759 = vrot.slane %v241, %v758
        %v764 = vunpack.c.l.b16 %v640
        %v765 = vunpack.c.l.b16 %v641
        %v766 = vunpack.c.l.b16 %v642
        %v767 = vunpack.c.l.b16 %v643
        %v768 = vpack.c.b16 %v765, %v764
        %v769 = vpack.c.b16 %v767, %v766
        %772 = vmatprep.subr.bf16.mxu0 0
        %773 = vmatpush1.bf16.msra.mxu0 0
        %774 = vmatprep.subr.bf16.mxu0 0
        %775 = vmatpush1.bf16.msra.mxu0 0
        %776 = vmatprep.subr.bf16.mxu0 0
        %777 = vmatpush1.bf16.msra.mxu0 0
        %778 = vmatprep.subr.bf16.mxu0 0
        %779 = vmatpush1.bf16.msra.mxu0 0
        %780 = vmatprep.subr.bf16.mxu0 0
        %781 = vmatpush1.bf16.msra.mxu0 0
        %782 = vmatprep.subr.bf16.mxu0 0
        %783 = vmatpush1.bf16.msra.mxu0 0
        %784 = vmatprep.subr.bf16.mxu0 0
        %785 = vmatpush1.bf16.msra.mxu0 %v769
        %786 = vmatprep.subr.bf16.mxu0 0
        %787 = vmatpush1.bf16.msra.mxu0 %v768
        %788 = vmatprep.subr.bf16.mxu0 0
        %789 = vmatpush2.bf16.msra.mxu0 0
        %790 = vmatprep.subr.bf16.mxu0 0
        %791 = vmatpush2.bf16.msra.mxu0 0
        %792 = vmatprep.subr.bf16.mxu0 0
        %793 = vmatpush2.bf16.msra.mxu0 0
        %794 = vmatprep.subr.bf16.mxu0 0
        %795 = vmatpush2.bf16.msra.mxu0 0
        %796 = vmatprep.subr.bf16.mxu0 0
        %797 = vmatpush2.bf16.msra.mxu0 0
        %798 = vmatprep.subr.bf16.mxu0 0
        %799 = vmatpush2.bf16.msra.mxu0 0
        %800 = vmatprep.subr.bf16.mxu0 0
        %801 = vmatpush2.bf16.msra.mxu0 0
        %802 = vmatprep.subr.bf16.mxu0 0
        %803 = vmatpush2.bf16.msra.mxu0 0
        %804 = vmatprep.mubr.bf16.mxu0 0
        %805 = vmatmul.mubr.bf16.gmra.mxu0 %v318
        %v806 = vpop.f32.mrf.mxu0
        %v807 = vadd.f32 %v759, %v806
        %v808 = vpop.f32.mrf.mxu0
        %v809 = vpop.f32.mrf.mxu0
        %v810 = vpop.f32.mrf.mxu0
        %811 = vdwg.mxu0
        %v813 = vsel %vm416, %v695, 0
        %v816 = vsel %vm416, %v751, 0
        %818 = vmatprep.subr.mxu0 0.0
        %819 = vmatpush1.xpose.msra.mxu0 0.0
        %820 = vmatprep.subr.mxu0 0.0
        %821 = vmatpush1.xpose.msra.mxu0 0.0
        %822 = vmatprep.subr.mxu0 0.0
        %823 = vmatpush1.xpose.msra.mxu0 0.0
        %824 = vmatprep.subr.mxu0 0.0
        %825 = vmatpush1.xpose.msra.mxu0 0.0
        %826 = vmatprep.subr.mxu0 0.0
        %827 = vmatpush1.xpose.msra.mxu0 0.0
        %828 = vmatprep.subr.mxu0 0.0
        %829 = vmatpush1.xpose.msra.mxu0 0.0
        %830 = vmatprep.subr.mxu0 0.0
        %831 = vmatpush1.xpose.msra.mxu0 0.0
        %832 = vmatprep.subr.mxu0 0.0
        %833 = vmatpush1.xpose.msra.mxu0 0.0
        %834 = vmatprep.subr.mxu0 0.0
        %835 = vmatpush1.xpose.msra.mxu0 0.0
        %836 = vmatprep.subr.mxu0 0.0
        %837 = vmatpush1.xpose.msra.mxu0 0.0
        %838 = vmatprep.subr.mxu0 0.0
        %839 = vmatpush1.xpose.msra.mxu0 0.0
        %840 = vmatprep.subr.mxu0 0.0
        %841 = vmatpush1.xpose.msra.mxu0 0.0
        %842 = vmatprep.subr.mxu0 0.0
        %843 = vmatpush1.xpose.msra.mxu0 0.0
        %844 = vmatprep.subr.mxu0 0.0
        %845 = vmatpush1.xpose.msra.mxu0 0.0
        %846 = vmatprep.subr.mxu0 0.0
        %847 = vmatpush1.xpose.msra.mxu0 0.0
        %848 = vmatprep.subr.mxu0 0.0
        %849 = vmatpush1.xpose.msra.mxu0 %v816
        %850 = vmatprep.subr.mxu0 0.0
        %851 = vmatpush2.xpose.msra.mxu0 0.0
        %852 = vmatprep.subr.mxu0 0.0
        %853 = vmatpush2.xpose.msra.mxu0 0.0
        %854 = vmatprep.subr.mxu0 0.0
        %855 = vmatpush2.xpose.msra.mxu0 0.0
        %856 = vmatprep.subr.mxu0 0.0
        %857 = vmatpush2.xpose.msra.mxu0 0.0
        %858 = vmatprep.subr.mxu0 0.0
        %859 = vmatpush2.xpose.msra.mxu0 0.0
        %860 = vmatprep.subr.mxu0 0.0
        %861 = vmatpush2.xpose.msra.mxu0 0.0
        %862 = vmatprep.subr.mxu0 0.0
        %863 = vmatpush2.xpose.msra.mxu0 0.0
        %864 = vmatprep.subr.mxu0 0.0
        %865 = vmatpush2.xpose.msra.mxu0 0.0
        %866 = vmatprep.subr.mxu0 0.0
        %867 = vmatpush2.xpose.msra.mxu0 0.0
        %868 = vmatprep.subr.mxu0 0.0
        %869 = vmatpush2.xpose.msra.mxu0 0.0
        %870 = vmatprep.subr.mxu0 0.0
        %871 = vmatpush2.xpose.msra.mxu0 0.0
        %872 = vmatprep.subr.mxu0 0.0
        %873 = vmatpush2.xpose.msra.mxu0 0.0
        %874 = vmatprep.subr.mxu0 0.0
        %875 = vmatpush2.xpose.msra.mxu0 0.0
        %876 = vmatprep.subr.mxu0 0.0
        %877 = vmatpush2.xpose.msra.mxu0 0.0
        %878 = vmatprep.subr.mxu0 0.0
        %879 = vmatpush2.xpose.msra.mxu0 0.0
        %880 = vmatprep.subr.mxu0 0.0
        %881 = vmatpush2.xpose.msra.mxu0 0.0
        %882 = vmatprep.mubr.f32.mxu0 0.0
        %883 = vmatmul.mubr.f32.gmra.mxu0 %v813
        %v884 = vpop.f32.mrf.mxu0
        %v885 = vadd.f32 0.0, %v884
        %v886 = vpop.f32.mrf.mxu0
        %887 = vdwg.mxu0
        %v888 = vsel %vm179, %v885, -1e+30
        %v889 = vsel %vm494, %v888, -inf
        %890 = vmax.xlane.f32.xlu0 %v889
        %v891 = vpop.xlane.xlu0 %890
        %v892 = vsub.f32 %v888, %v891
        %v893 = vmul.f32 %v892, 1.442695
        %v894 = vpow.pop %v893
        %v895 = vsel %vm494, %v894, 0.0
        %896 = vadd.xlane.f32.xlu0 %v895
        %v897 = vpop.xlane.xlu0 %896
        %v898 = vrcp.pop %v897
        %v899 = vmul.f32 %v894, %v898
        %v901 = vsel %vm494, %v899, 0
        %903 = vmatprep.subr.mxu0 0.0
        %904 = vmatpush1.msra.mxu0 0.0
        %905 = vmatprep.subr.mxu0 0.0
        %906 = vmatpush1.msra.mxu0 0.0
        %907 = vmatprep.subr.mxu0 0.0
        %908 = vmatpush1.msra.mxu0 0.0
        %909 = vmatprep.subr.mxu0 0.0
        %910 = vmatpush1.msra.mxu0 0.0
        %911 = vmatprep.subr.mxu0 0.0
        %912 = vmatpush1.msra.mxu0 0.0
        %913 = vmatprep.subr.mxu0 0.0
        %914 = vmatpush1.msra.mxu0 0.0
        %915 = vmatprep.subr.mxu0 0.0
        %916 = vmatpush1.msra.mxu0 0.0
        %917 = vmatprep.subr.mxu0 0.0
        %918 = vmatpush1.msra.mxu0 0.0
        %919 = vmatprep.subr.mxu0 0.0
        %920 = vmatpush1.msra.mxu0 0.0
        %921 = vmatprep.subr.mxu0 0.0
        %922 = vmatpush1.msra.mxu0 0.0
        %923 = vmatprep.subr.mxu0 0.0
        %924 = vmatpush1.msra.mxu0 0.0
        %925 = vmatprep.subr.mxu0 0.0
        %926 = vmatpush1.msra.mxu0 0.0
        %927 = vmatprep.subr.mxu0 0.0
        %928 = vmatpush1.msra.mxu0 0.0
        %929 = vmatprep.subr.mxu0 0.0
        %930 = vmatpush1.msra.mxu0 0.0
        %931 = vmatprep.subr.mxu0 0.0
        %932 = vmatpush1.msra.mxu0 0.0
        %933 = vmatprep.subr.mxu0 0.0
        %934 = vmatpush1.msra.mxu0 %v807
        %935 = vmatprep.subr.mxu0 0.0
        %936 = vmatpush2.msra.mxu0 0.0
        %937 = vmatprep.subr.mxu0 0.0
        %938 = vmatpush2.msra.mxu0 0.0
        %939 = vmatprep.subr.mxu0 0.0
        %940 = vmatpush2.msra.mxu0 0.0
        %941 = vmatprep.subr.mxu0 0.0
        %942 = vmatpush2.msra.mxu0 0.0
        %943 = vmatprep.subr.mxu0 0.0
        %944 = vmatpush2.msra.mxu0 0.0
        %945 = vmatprep.subr.mxu0 0.0
        %946 = vmatpush2.msra.mxu0 0.0
        %947 = vmatprep.subr.mxu0 0.0
        %948 = vmatpush2.msra.mxu0 0.0
        %949 = vmatprep.subr.mxu0 0.0
        %950 = vmatpush2.msra.mxu0 0.0
        %951 = vmatprep.subr.mxu0 0.0
        %952 = vmatpush2.msra.mxu0 0.0
        %953 = vmatprep.subr.mxu0 0.0
        %954 = vmatpush2.msra.mxu0 0.0
        %955 = vmatprep.subr.mxu0 0.0
        %956 = vmatpush2.msra.mxu0 0.0
        %957 = vmatprep.subr.mxu0 0.0
        %958 = vmatpush2.msra.mxu0 0.0
        %959 = vmatprep.subr.mxu0 0.0
        %960 = vmatpush2.msra.mxu0 0.0
        %961 = vmatprep.subr.mxu0 0.0
        %962 = vmatpush2.msra.mxu0 0.0
        %963 = vmatprep.subr.mxu0 0.0
        %964 = vmatpush2.msra.mxu0 0.0
        %965 = vmatprep.subr.mxu0 0.0
        %966 = vmatpush2.msra.mxu0 0.0
        %967 = vmatprep.mubr.f32.mxu0 0.0
        %968 = vmatmul.mubr.f32.gmra.mxu0 %v901
        %v969 = vpop.f32.mrf.mxu0
        %v970 = vadd.f32 0.0, %v969
        %v971 = vpop.f32.mrf.mxu0
        %972 = vdwg.mxu0
        %v973 = vld [vmem:[#allocation5 + $0x70] sm:$0xf]
        %v974 = vld [vmem:[#allocation5 + $0x74] sm:$0xf]
        %v975 = vpack.c.bf16 %v970, %v970
        %v978 = vunpack.c.l.b16 %v973
        %v979 = vunpack.c.l.b16 %v974
        %v980 = vpack.c.b16 %v979, %v978
        %v983 = vsel %vm416, %v975, 0
        %985 = vmatprep.subr.bf16.mxu0 0
        %986 = vmatpush1.bf16.msra.mxu0 0
        %987 = vmatprep.subr.bf16.mxu0 0
        %988 = vmatpush1.bf16.msra.mxu0 0
        %989 = vmatprep.subr.bf16.mxu0 0
        %990 = vmatpush1.bf16.msra.mxu0 0
        %991 = vmatprep.subr.bf16.mxu0 0
        %992 = vmatpush1.bf16.msra.mxu0 0
        %993 = vmatprep.subr.bf16.mxu0 0
        %994 = vmatpush1.bf16.msra.mxu0 0
        %995 = vmatprep.subr.bf16.mxu0 0
        %996 = vmatpush1.bf16.msra.mxu0 0
        %997 = vmatprep.subr.bf16.mxu0 0
        %998 = vmatpush1.bf16.msra.mxu0 0
        %999 = vmatprep.subr.bf16.mxu0 0
        %1000 = vmatpush1.bf16.msra.mxu0 %v980
        %1001 = vmatprep.subr.bf16.mxu0 0
        %1002 = vmatpush2.bf16.msra.mxu0 0
        %1003 = vmatprep.subr.bf16.mxu0 0
        %1004 = vmatpush2.bf16.msra.mxu0 0
        %1005 = vmatprep.subr.bf16.mxu0 0
        %1006 = vmatpush2.bf16.msra.mxu0 0
        %1007 = vmatprep.subr.bf16.mxu0 0
        %1008 = vmatpush2.bf16.msra.mxu0 0
        %1009 = vmatprep.subr.bf16.mxu0 0
        %1010 = vmatpush2.bf16.msra.mxu0 0
        %1011 = vmatprep.subr.bf16.mxu0 0
        %1012 = vmatpush2.bf16.msra.mxu0 0
        %1013 = vmatprep.subr.bf16.mxu0 0
        %1014 = vmatpush2.bf16.msra.mxu0 0
        %1015 = vmatprep.subr.bf16.mxu0 0
        %1016 = vmatpush2.bf16.msra.mxu0 0
        %1017 = vmatprep.mubr.bf16.mxu0 0
        %1018 = vmatmul.mubr.bf16.gmra.mxu0 %v983
        %v1019 = vpop.f32.mrf.mxu0
        %v1020 = vadd.f32 0.0, %v1019
        %v1021 = vpop.f32.mrf.mxu0
        %v1022 = vpop.f32.mrf.mxu0
        %v1023 = vpop.f32.mrf.mxu0
        %1024 = vdwg.mxu0
        %v1025 = vadd.f32 %v631, %v1020
        %v1026 = vadd.f32 %v217, %v1025
        %v1027 = vsel %vm193, %v1026, 0.0
        %1028 = vadd.xlane.f32.xlu0 %v1027
        %v1029 = vpop.xlane.xlu0 %1028
        %v1030 = vmul.f32 %v1029, %v197
        %v1031 = vsub.f32 %v1026, %v1030
        %v1032 = vmul.f32 %v1031, %v1031
        %v1033 = vsel %vm193, %v1032, 0.0
        %1034 = vadd.xlane.f32.xlu0 %v1033
        %v1035 = vpop.xlane.xlu0 %1034
        %v1036 = vmul.f32 %v1035, %v197
        %v1037 = vadd.f32 %v1036, 1e-05
        %v1038 = vrsqrt.pop %v1037
        %v1039 = vmul.f32 %v1031, %v1038
        %v1040 = vlaneseq
        %v1041 = vshrl.u32 %v1040, 7
        %v1042 = vsub.s32 1, %v1041
        %v1043 = vrot.slane %v188, %v1042
        %v1044 = vmul.f32 %v1039, %v1043
        %v1045 = vlaneseq
        %v1046 = vshrl.u32 %v1045, 7
        %v1047 = vsub.s32 2, %v1046
        %v1048 = vrot.slane %v190, %v1047
        %v1049 = vadd.f32 %v1044, %v1048
        %v1050 = vld [vmem:[#allocation5 + $0x78] sm:$0xf]
        %v1051 = vld [vmem:[#allocation5 + $0x7c] sm:$0xf]
        %v1052 = vld [vmem:[#allocation5 + $0x80] sm:$0xf]
        %v1053 = vld [vmem:[#allocation5 + $0x84] sm:$0xf]
        %v1054 = vld [vmem:[#allocation5 + $0x88] sm:$0xf]
        %v1055 = vld [vmem:[#allocation5 + $0x8c] sm:$0xf]
        %v1056 = vld [vmem:[#allocation5 + $0x90] sm:$0xf]
        %v1057 = vld [vmem:[#allocation5 + $0x94] sm:$0xf]
        %v1058 = vld [vmem:[#allocation5 + $0x98] sm:$0xf]
        %v1059 = vld [vmem:[#allocation5 + $0x9c] sm:$0xf]
        %v1060 = vld [vmem:[#allocation5 + $0xa0] sm:$0xf]
        %v1061 = vld [vmem:[#allocation5 + $0xa4] sm:$0xf]
        %v1062 = vpack.c.bf16 %v1049, %v1049
        %v1063 = vlaneseq
        %v1064 = vshrl.u32 %v1063, 7
        %v1065 = vsub.s32 3, %v1064
        %v1066 = vrot.slane %v190, %v1065
        %v1071 = vunpack.c.l.b16 %v1050
        %v1072 = vunpack.c.l.b16 %v1051
        %v1073 = vunpack.c.l.b16 %v1052
        %v1074 = vunpack.c.l.b16 %v1053
        %v1075 = vpack.c.b16 %v1072, %v1071
        %v1076 = vpack.c.b16 %v1074, %v1073
        %v1080 = vsel %vm193, %v1062, 0
        %1082 = vmatprep.subr.bf16.mxu0 0
        %1083 = vmatpush1.bf16.msra.mxu0 0
        %1084 = vmatprep.subr.bf16.mxu0 0
        %1085 = vmatpush1.bf16.msra.mxu0 0
        %1086 = vmatprep.subr.bf16.mxu0 0
        %1087 = vmatpush1.bf16.msra.mxu0 0
        %1088 = vmatprep.subr.bf16.mxu0 0
        %1089 = vmatpush1.bf16.msra.mxu0 0
        %1090 = vmatprep.subr.bf16.mxu0 0
        %1091 = vmatpush1.bf16.msra.mxu0 0
        %1092 = vmatprep.subr.bf16.mxu0 0
        %1093 = vmatpush1.bf16.msra.mxu0 0
        %1094 = vmatprep.subr.bf16.mxu0 0
        %1095 = vmatpush1.bf16.msra.mxu0 %v1076
        %1096 = vmatprep.subr.bf16.mxu0 0
        %1097 = vmatpush1.bf16.msra.mxu0 %v1075
        %1098 = vmatprep.subr.bf16.mxu0 0
        %1099 = vmatpush2.bf16.msra.mxu0 0
        %1100 = vmatprep.subr.bf16.mxu0 0
        %1101 = vmatpush2.bf16.msra.mxu0 0
        %1102 = vmatprep.subr.bf16.mxu0 0
        %1103 = vmatpush2.bf16.msra.mxu0 0
        %1104 = vmatprep.subr.bf16.mxu0 0
        %1105 = vmatpush2.bf16.msra.mxu0 0
        %1106 = vmatprep.subr.bf16.mxu0 0
        %1107 = vmatpush2.bf16.msra.mxu0 0
        %1108 = vmatprep.subr.bf16.mxu0 0
        %1109 = vmatpush2.bf16.msra.mxu0 0
        %1110 = vmatprep.subr.bf16.mxu0 0
        %1111 = vmatpush2.bf16.msra.mxu0 0
        %1112 = vmatprep.subr.bf16.mxu0 0
        %1113 = vmatpush2.bf16.msra.mxu0 0
        %1114 = vmatprep.mubr.bf16.mxu0 0
        %1115 = vmatmul.mubr.bf16.gmra.mxu0 %v1080
        %v1116 = vpop.f32.mrf.mxu0
        %v1117 = vadd.f32 %v1066, %v1116
        %v1118 = vpop.f32.mrf.mxu0
        %v1119 = vpop.f32.mrf.mxu0
        %v1120 = vpop.f32.mrf.mxu0
        %1121 = vdwg.mxu0
        %v1122 = vmax.f32 %v1117, 0.0
        %v1123 = vpack.c.bf16 %v1122, %v1122
        %v1132 = vunpack.c.l.b16 %v1054
        %v1133 = vunpack.c.l.b16 %v1055
        %v1134 = vunpack.c.l.b16 %v1056
        %v1135 = vunpack.c.l.b16 %v1057
        %v1136 = vunpack.c.l.b16 %v1058
        %v1137 = vunpack.c.l.b16 %v1059
        %v1138 = vunpack.c.l.b16 %v1060
        %v1139 = vunpack.c.l.b16 %v1061
        %v1140 = vpack.c.b16 %v1133, %v1132
        %v1141 = vpack.c.b16 %v1135, %v1134
        %v1142 = vpack.c.b16 %v1137, %v1136
        %v1143 = vpack.c.b16 %v1139, %v1138
        %vm1148 = vcmask 523264
        %v1150 = vsel %vm1148, %v1123, 0
        %1152 = vmatprep.subr.bf16.mxu0 0
        %1153 = vmatpush1.bf16.msra.mxu0 0
        %1154 = vmatprep.subr.bf16.mxu0 0
        %1155 = vmatpush1.bf16.msra.mxu0 0
        %1156 = vmatprep.subr.bf16.mxu0 0
        %1157 = vmatpush1.bf16.msra.mxu0 0
        %1158 = vmatprep.subr.bf16.mxu0 0
        %1159 = vmatpush1.bf16.msra.mxu0 0
        %1160 = vmatprep.subr.bf16.mxu0 0
        %1161 = vmatpush1.bf16.msra.mxu0 %v1143
        %1162 = vmatprep.subr.bf16.mxu0 0
        %1163 = vmatpush1.bf16.msra.mxu0 %v1142
        %1164 = vmatprep.subr.bf16.mxu0 0
        %1165 = vmatpush1.bf16.msra.mxu0 %v1141
        %1166 = vmatprep.subr.bf16.mxu0 0
        %1167 = vmatpush1.bf16.msra.mxu0 %v1140
        %1168 = vmatprep.subr.bf16.mxu0 0
        %1169 = vmatpush2.bf16.msra.mxu0 0
        %1170 = vmatprep.subr.bf16.mxu0 0
        %1171 = vmatpush2.bf16.msra.mxu0 0
        %1172 = vmatprep.subr.bf16.mxu0 0
        %1173 = vmatpush2.bf16.msra.mxu0 0
        %1174 = vmatprep.subr.bf16.mxu0 0
        %1175 = vmatpush2.bf16.msra.mxu0 0
        %1176 = vmatprep.subr.bf16.mxu0 0
        %1177 = vmatpush2.bf16.msra.mxu0 0
        %1178 = vmatprep.subr.bf16.mxu0 0
        %1179 = vmatpush2.bf16.msra.mxu0 0
        %1180 = vmatprep.subr.bf16.mxu0 0
        %1181 = vmatpush2.bf16.msra.mxu0 0
        %1182 = vmatprep.subr.bf16.mxu0 0
        %1183 = vmatpush2.bf16.msra.mxu0 0
        %1184 = vmatprep.mubr.bf16.mxu0 0
        %1185 = vmatmul.mubr.bf16.gmra.mxu0 %v1150
        %v1186 = vpop.f32.mrf.mxu0
        %v1187 = vadd.f32 0.0, %v1186
        %v1188 = vpop.f32.mrf.mxu0
        %v1189 = vpop.f32.mrf.mxu0
        %v1190 = vpop.f32.mrf.mxu0
        %1191 = vdwg.mxu0
        %v1192 = vadd.f32 %v1049, %v1187
        %v1193 = vlaneseq
        %v1194 = vshrl.u32 %v1193, 7
        %v1195 = vsub.s32 4, %v1194
        %v1196 = vrot.slane %v192, %v1195
        %v1197 = vadd.f32 %v1192, %v1196
        %v1198 = vld [vmem:[#allocation5 + $0x150] sm:$0x1]
        %v1199 = vunpack.c.l.bf16 %v1198
        %v1200 = vld [vmem:[#allocation5 + $0x154] sm:$0x1]
        %v1201 = vunpack.c.l.bf16 %v1200
        %v1202 = vld [vmem:[#allocation5 + $0x154] sm:$0x2]
        %v1203 = vunpack.c.l.bf16 %v1202
        %v1204 = vld [vmem:[#allocation5 + $0x154] sm:$0x4]
        %v1205 = vunpack.c.l.bf16 %v1204
        %v1206 = vsel %vm193, %v1197, 0.0
        %1207 = vadd.xlane.f32.xlu0 %v1206
        %v1208 = vpop.xlane.xlu0 %1207
        %v1209 = vmul.f32 %v1208, %v197
        %v1210 = vsub.f32 %v1197, %v1209
        %v1211 = vmul.f32 %v1210, %v1210
        %v1212 = vsel %vm193, %v1211, 0.0
        %1213 = vadd.xlane.f32.xlu0 %v1212
        %v1214 = vpop.xlane.xlu0 %1213
        %v1215 = vmul.f32 %v1214, %v197
        %v1216 = vadd.f32 %v1215, 1e-05
        %v1217 = vrsqrt.pop %v1216
        %v1218 = vmul.f32 %v1210, %v1217
        %v1219 = vlaneseq
        %v1220 = vshrl.u32 %v1219, 7
        %v1221 = vsub.s32 0, %v1220
        %v1222 = vrot.slane %v1199, %v1221
        %v1223 = vmul.f32 %v1218, %v1222
        %v1224 = vlaneseq
        %v1225 = vshrl.u32 %v1224, 7
        %v1226 = vsub.s32 1, %v1225
        %v1227 = vrot.slane %v1199, %v1226
        %v1228 = vadd.f32 %v1223, %v1227
        %v1229 = vpack.c.bf16 %v1228, %v1228
        %v1230 = vpack.c.bf16 %v1197, %v1197
        %v1231 = vlaneseq
        %v1232 = vshrl.u32 %v1231, 7
        %v1233 = vsub.s32 0, %v1232
        %v1234 = vrot.slane %v1201, %v1233
        %v1235 = vld [vmem:[#allocation5 + $0xb0] sm:$0xf]
        %v1236 = vld [vmem:[#allocation5 + $0xb4] sm:$0xf]
        %v1237 = vld [vmem:[#allocation5 + $0xb8] sm:$0xf]
        %v1238 = vld [vmem:[#allocation5 + $0xbc] sm:$0xf]
        %v1239 = vld [vmem:[#allocation5 + $0xd0] sm:$0xf]
        %v1240 = vld [vmem:[#allocation5 + $0xd4] sm:$0xf]
        %v1241 = vld [vmem:[#allocation5 + $0xd8] sm:$0xf]
        %v1242 = vld [vmem:[#allocation5 + $0xdc] sm:$0xf]
        %v1243 = vld [vmem:[#allocation5 + $0xf0] sm:$0xf]
        %v1244 = vld [vmem:[#allocation5 + $0xf4] sm:$0xf]
        %v1245 = vld [vmem:[#allocation5 + $0xf8] sm:$0xf]
        %v1246 = vld [vmem:[#allocation5 + $0xfc] sm:$0xf]
        %v1247 = vld [vmem:[#allocation5 + $0x150] sm:$0x2]
        %v1248 = vunpack.c.l.bf16 %v1247
        %v1249 = vld [vmem:[#allocation5 + $0x150] sm:$0x4]
        %v1250 = vunpack.c.l.bf16 %v1249
        %v1251 = vld [vmem:[#allocation5 + $0x150] sm:$0x8]
        %v1252 = vunpack.c.l.bf16 %v1251
        %v1253 = vlaneseq
        %v1254 = vshrl.u32 %v1253, 7
        %v1255 = vsub.s32 2, %v1254
        %v1256 = vrot.slane %v1248, %v1255
        %v1261 = vunpack.c.l.b16 %v1235
        %v1262 = vunpack.c.l.b16 %v1236
        %v1263 = vunpack.c.l.b16 %v1237
        %v1264 = vunpack.c.l.b16 %v1238
        %v1265 = vpack.c.b16 %v1262, %v1261
        %v1266 = vpack.c.b16 %v1264, %v1263
        %v1270 = vsel %vm193, %v1229, 0
        %1272 = vmatprep.subr.bf16.mxu0 0
        %1273 = vmatpush1.bf16.msra.mxu0 0
        %1274 = vmatprep.subr.bf16.mxu0 0
        %1275 = vmatpush1.bf16.msra.mxu0 0
        %1276 = vmatprep.subr.bf16.mxu0 0
        %1277 = vmatpush1.bf16.msra.mxu0 0
        %1278 = vmatprep.subr.bf16.mxu0 0
        %1279 = vmatpush1.bf16.msra.mxu0 0
        %1280 = vmatprep.subr.bf16.mxu0 0
        %1281 = vmatpush1.bf16.msra.mxu0 0
        %1282 = vmatprep.subr.bf16.mxu0 0
        %1283 = vmatpush1.bf16.msra.mxu0 0
        %1284 = vmatprep.subr.bf16.mxu0 0
        %1285 = vmatpush1.bf16.msra.mxu0 %v1266
        %1286 = vmatprep.subr.bf16.mxu0 0
        %1287 = vmatpush1.bf16.msra.mxu0 %v1265
        %1288 = vmatprep.subr.bf16.mxu0 0
        %1289 = vmatpush2.bf16.msra.mxu0 0
        %1290 = vmatprep.subr.bf16.mxu0 0
        %1291 = vmatpush2.bf16.msra.mxu0 0
        %1292 = vmatprep.subr.bf16.mxu0 0
        %1293 = vmatpush2.bf16.msra.mxu0 0
        %1294 = vmatprep.subr.bf16.mxu0 0
        %1295 = vmatpush2.bf16.msra.mxu0 0
        %1296 = vmatprep.subr.bf16.mxu0 0
        %1297 = vmatpush2.bf16.msra.mxu0 0
        %1298 = vmatprep.subr.bf16.mxu0 0
        %1299 = vmatpush2.bf16.msra.mxu0 0
        %1300 = vmatprep.subr.bf16.mxu0 0
        %1301 = vmatpush2.bf16.msra.mxu0 0
        %1302 = vmatprep.subr.bf16.mxu0 0
        %1303 = vmatpush2.bf16.msra.mxu0 0
        %1304 = vmatprep.mubr.bf16.mxu0 0
        %1305 = vmatmul.mubr.bf16.gmra.mxu0 %v1270
        %v1306 = vpop.f32.mrf.mxu0
        %v1307 = vadd.f32 %v1256, %v1306
        %v1308 = vpop.f32.mrf.mxu0
        %v1309 = vpop.f32.mrf.mxu0
        %v1310 = vpop.f32.mrf.mxu0
        %1311 = vdwg.mxu0
        %v1312 = vlaneseq
        %v1313 = vshrl.u32 %v1312, 7
        %v1314 = vsub.s32 4, %v1313
        %v1315 = vrot.slane %v1250, %v1314
        %v1320 = vunpack.c.l.b16 %v1239
        %v1321 = vunpack.c.l.b16 %v1240
        %v1322 = vunpack.c.l.b16 %v1241
        %v1323 = vunpack.c.l.b16 %v1242
        %v1324 = vpack.c.b16 %v1321, %v1320
        %v1325 = vpack.c.b16 %v1323, %v1322
        %v1329 = vsel %vm193, %v1230, 0
        %1331 = vmatprep.subr.bf16.mxu0 0
        %1332 = vmatpush1.bf16.msra.mxu0 0
        %1333 = vmatprep.subr.bf16.mxu0 0
        %1334 = vmatpush1.bf16.msra.mxu0 0
        %1335 = vmatprep.subr.bf16.mxu0 0
        %1336 = vmatpush1.bf16.msra.mxu0 0
        %1337 = vmatprep.subr.bf16.mxu0 0
        %1338 = vmatpush1.bf16.msra.mxu0 0
        %1339 = vmatprep.subr.bf16.mxu0 0
        %1340 = vmatpush1.bf16.msra.mxu0 0
        %1341 = vmatprep.subr.bf16.mxu0 0
        %1342 = vmatpush1.bf16.msra.mxu0 0
        %1343 = vmatprep.subr.bf16.mxu0 0
        %1344 = vmatpush1.bf16.msra.mxu0 %v1325
        %1345 = vmatprep.subr.bf16.mxu0 0
        %1346 = vmatpush1.bf16.msra.mxu0 %v1324
        %1347 = vmatprep.subr.bf16.mxu0 0
        %1348 = vmatpush2.bf16.msra.mxu0 0
        %1349 = vmatprep.subr.bf16.mxu0 0
        %1350 = vmatpush2.bf16.msra.mxu0 0
        %1351 = vmatprep.subr.bf16.mxu0 0
        %1352 = vmatpush2.bf16.msra.mxu0 0
        %1353 = vmatprep.subr.bf16.mxu0 0
        %1354 = vmatpush2.bf16.msra.mxu0 0
        %1355 = vmatprep.subr.bf16.mxu0 0
        %1356 = vmatpush2.bf16.msra.mxu0 0
        %1357 = vmatprep.subr.bf16.mxu0 0
        %1358 = vmatpush2.bf16.msra.mxu0 0
        %1359 = vmatprep.subr.bf16.mxu0 0
        %1360 = vmatpush2.bf16.msra.mxu0 0
        %1361 = vmatprep.subr.bf16.mxu0 0
        %1362 = vmatpush2.bf16.msra.mxu0 0
        %1363 = vmatprep.mubr.bf16.mxu0 0
        %1364 = vmatmul.mubr.bf16.gmra.mxu0 %v1329
        %v1365 = vpop.f32.mrf.mxu0
        %v1366 = vadd.f32 %v1315, %v1365
        %v1367 = vpop.f32.mrf.mxu0
        %v1368 = vpop.f32.mrf.mxu0
        %v1369 = vpop.f32.mrf.mxu0
        %1370 = vdwg.mxu0
        %v1371 = vlaneseq
        %v1372 = vshrl.u32 %v1371, 7
        %v1373 = vsub.s32 6, %v1372
        %v1374 = vrot.slane %v1252, %v1373
        %v1379 = vunpack.c.l.b16 %v1243
        %v1380 = vunpack.c.l.b16 %v1244
        %v1381 = vunpack.c.l.b16 %v1245
        %v1382 = vunpack.c.l.b16 %v1246
        %v1383 = vpack.c.b16 %v1380, %v1379
        %v1384 = vpack.c.b16 %v1382, %v1381
        %1387 = vmatprep.subr.bf16.mxu0 0
        %1388 = vmatpush1.bf16.msra.mxu0 0
        %1389 = vmatprep.subr.bf16.mxu0 0
        %1390 = vmatpush1.bf16.msra.mxu0 0
        %1391 = vmatprep.subr.bf16.mxu0 0
        %1392 = vmatpush1.bf16.msra.mxu0 0
        %1393 = vmatprep.subr.bf16.mxu0 0
        %1394 = vmatpush1.bf16.msra.mxu0 0
        %1395 = vmatprep.subr.bf16.mxu0 0
        %1396 = vmatpush1.bf16.msra.mxu0 0
        %1397 = vmatprep.subr.bf16.mxu0 0
        %1398 = vmatpush1.bf16.msra.mxu0 0
        %1399 = vmatprep.subr.bf16.mxu0 0
        %1400 = vmatpush1.bf16.msra.mxu0 %v1384
        %1401 = vmatprep.subr.bf16.mxu0 0
        %1402 = vmatpush1.bf16.msra.mxu0 %v1383
        %1403 = vmatprep.subr.bf16.mxu0 0
        %1404 = vmatpush2.bf16.msra.mxu0 0
        %1405 = vmatprep.subr.bf16.mxu0 0
        %1406 = vmatpush2.bf16.msra.mxu0 0
        %1407 = vmatprep.subr.bf16.mxu0 0
        %1408 = vmatpush2.bf16.msra.mxu0 0
        %1409 = vmatprep.subr.bf16.mxu0 0
        %1410 = vmatpush2.bf16.msra.mxu0 0
        %1411 = vmatprep.subr.bf16.mxu0 0
        %1412 = vmatpush2.bf16.msra.mxu0 0
        %1413 = vmatprep.subr.bf16.mxu0 0
        %1414 = vmatpush2.bf16.msra.mxu0 0
        %1415 = vmatprep.subr.bf16.mxu0 0
        %1416 = vmatpush2.bf16.msra.mxu0 0
        %1417 = vmatprep.subr.bf16.mxu0 0
        %1418 = vmatpush2.bf16.msra.mxu0 0
        %1419 = vmatprep.mubr.bf16.mxu0 0
        %1420 = vmatmul.mubr.bf16.gmra.mxu0 %v1329
        %v1421 = vpop.f32.mrf.mxu0
        %v1422 = vadd.f32 %v1374, %v1421
        %v1423 = vpop.f32.mrf.mxu0
        %v1424 = vpop.f32.mrf.mxu0
        %v1425 = vpop.f32.mrf.mxu0
        %1426 = vdwg.mxu0
        %v1428 = vsel %vm416, %v1307, 0
        %v1431 = vsel %vm416, %v1366, 0
        %1433 = vmatprep.subr.mxu0 0.0
        %1434 = vmatpush1.xpose.msra.mxu0 0.0
        %1435 = vmatprep.subr.mxu0 0.0
        %1436 = vmatpush1.xpose.msra.mxu0 0.0
        %1437 = vmatprep.subr.mxu0 0.0
        %1438 = vmatpush1.xpose.msra.mxu0 0.0
        %1439 = vmatprep.subr.mxu0 0.0
        %1440 = vmatpush1.xpose.msra.mxu0 0.0
        %1441 = vmatprep.subr.mxu0 0.0
        %1442 = vmatpush1.xpose.msra.mxu0 0.0
        %1443 = vmatprep.subr.mxu0 0.0
        %1444 = vmatpush1.xpose.msra.mxu0 0.0
        %1445 = vmatprep.subr.mxu0 0.0
        %1446 = vmatpush1.xpose.msra.mxu0 0.0
        %1447 = vmatprep.subr.mxu0 0.0
        %1448 = vmatpush1.xpose.msra.mxu0 0.0
        %1449 = vmatprep.subr.mxu0 0.0
        %1450 = vmatpush1.xpose.msra.mxu0 0.0
        %1451 = vmatprep.subr.mxu0 0.0
        %1452 = vmatpush1.xpose.msra.mxu0 0.0
        %1453 = vmatprep.subr.mxu0 0.0
        %1454 = vmatpush1.xpose.msra.mxu0 0.0
        %1455 = vmatprep.subr.mxu0 0.0
        %1456 = vmatpush1.xpose.msra.mxu0 0.0
        %1457 = vmatprep.subr.mxu0 0.0
        %1458 = vmatpush1.xpose.msra.mxu0 0.0
        %1459 = vmatprep.subr.mxu0 0.0
        %1460 = vmatpush1.xpose.msra.mxu0 0.0
        %1461 = vmatprep.subr.mxu0 0.0
        %1462 = vmatpush1.xpose.msra.mxu0 0.0
        %1463 = vmatprep.subr.mxu0 0.0
        %1464 = vmatpush1.xpose.msra.mxu0 %v1431
        %1465 = vmatprep.subr.mxu0 0.0
        %1466 = vmatpush2.xpose.msra.mxu0 0.0
        %1467 = vmatprep.subr.mxu0 0.0
        %1468 = vmatpush2.xpose.msra.mxu0 0.0
        %1469 = vmatprep.subr.mxu0 0.0
        %1470 = vmatpush2.xpose.msra.mxu0 0.0
        %1471 = vmatprep.subr.mxu0 0.0
        %1472 = vmatpush2.xpose.msra.mxu0 0.0
        %1473 = vmatprep.subr.mxu0 0.0
        %1474 = vmatpush2.xpose.msra.mxu0 0.0
        %1475 = vmatprep.subr.mxu0 0.0
        %1476 = vmatpush2.xpose.msra.mxu0 0.0
        %1477 = vmatprep.subr.mxu0 0.0
        %1478 = vmatpush2.xpose.msra.mxu0 0.0
        %1479 = vmatprep.subr.mxu0 0.0
        %1480 = vmatpush2.xpose.msra.mxu0 0.0
        %1481 = vmatprep.subr.mxu0 0.0
        %1482 = vmatpush2.xpose.msra.mxu0 0.0
        %1483 = vmatprep.subr.mxu0 0.0
        %1484 = vmatpush2.xpose.msra.mxu0 0.0
        %1485 = vmatprep.subr.mxu0 0.0
        %1486 = vmatpush2.xpose.msra.mxu0 0.0
        %1487 = vmatprep.subr.mxu0 0.0
        %1488 = vmatpush2.xpose.msra.mxu0 0.0
        %1489 = vmatprep.subr.mxu0 0.0
        %1490 = vmatpush2.xpose.msra.mxu0 0.0
        %1491 = vmatprep.subr.mxu0 0.0
        %1492 = vmatpush2.xpose.msra.mxu0 0.0
        %1493 = vmatprep.subr.mxu0 0.0
        %1494 = vmatpush2.xpose.msra.mxu0 0.0
        %1495 = vmatprep.subr.mxu0 0.0
        %1496 = vmatpush2.xpose.msra.mxu0 0.0
        %1497 = vmatprep.mubr.f32.mxu0 0.0
        %1498 = vmatmul.mubr.f32.gmra.mxu0 %v1428
        %v1499 = vpop.f32.mrf.mxu0
        %v1500 = vadd.f32 0.0, %v1499
        %v1501 = vpop.f32.mrf.mxu0
        %1502 = vdwg.mxu0
        %v1503 = vsel %vm179, %v1500, -1e+30
        %v1504 = vsel %vm494, %v1503, -inf
        %1505 = vmax.xlane.f32.xlu0 %v1504
        %v1506 = vpop.xlane.xlu0 %1505
        %v1507 = vsub.f32 %v1503, %v1506
        %v1508 = vmul.f32 %v1507, 1.442695
        %v1509 = vpow.pop %v1508
        %v1510 = vsel %vm494, %v1509, 0.0
        %1511 = vadd.xlane.f32.xlu0 %v1510
        %v1512 = vpop.xlane.xlu0 %1511
        %v1513 = vrcp.pop %v1512
        %v1514 = vmul.f32 %v1509, %v1513
        %v1516 = vsel %vm494, %v1514, 0
        %1518 = vmatprep.subr.mxu0 0.0
        %1519 = vmatpush1.msra.mxu0 0.0
        %1520 = vmatprep.subr.mxu0 0.0
        %1521 = vmatpush1.msra.mxu0 0.0
        %1522 = vmatprep.subr.mxu0 0.0
        %1523 = vmatpush1.msra.mxu0 0.0
        %1524 = vmatprep.subr.mxu0 0.0
        %1525 = vmatpush1.msra.mxu0 0.0
        %1526 = vmatprep.subr.mxu0 0.0
        %1527 = vmatpush1.msra.mxu0 0.0
        %1528 = vmatprep.subr.mxu0 0.0
        %1529 = vmatpush1.msra.mxu0 0.0
        %1530 = vmatprep.subr.mxu0 0.0
        %1531 = vmatpush1.msra.mxu0 0.0
        %1532 = vmatprep.subr.mxu0 0.0
        %1533 = vmatpush1.msra.mxu0 0.0
        %1534 = vmatprep.subr.mxu0 0.0
        %1535 = vmatpush1.msra.mxu0 0.0
        %1536 = vmatprep.subr.mxu0 0.0
        %1537 = vmatpush1.msra.mxu0 0.0
        %1538 = vmatprep.subr.mxu0 0.0
        %1539 = vmatpush1.msra.mxu0 0.0
        %1540 = vmatprep.subr.mxu0 0.0
        %1541 = vmatpush1.msra.mxu0 0.0
        %1542 = vmatprep.subr.mxu0 0.0
        %1543 = vmatpush1.msra.mxu0 0.0
        %1544 = vmatprep.subr.mxu0 0.0
        %1545 = vmatpush1.msra.mxu0 0.0
        %1546 = vmatprep.subr.mxu0 0.0
        %1547 = vmatpush1.msra.mxu0 0.0
        %1548 = vmatprep.subr.mxu0 0.0
        %1549 = vmatpush1.msra.mxu0 %v1422
        %1550 = vmatprep.subr.mxu0 0.0
        %1551 = vmatpush2.msra.mxu0 0.0
        %1552 = vmatprep.subr.mxu0 0.0
        %1553 = vmatpush2.msra.mxu0 0.0
        %1554 = vmatprep.subr.mxu0 0.0
        %1555 = vmatpush2.msra.mxu0 0.0
        %1556 = vmatprep.subr.mxu0 0.0
        %1557 = vmatpush2.msra.mxu0 0.0
        %1558 = vmatprep.subr.mxu0 0.0
        %1559 = vmatpush2.msra.mxu0 0.0
        %1560 = vmatprep.subr.mxu0 0.0
        %1561 = vmatpush2.msra.mxu0 0.0
        %1562 = vmatprep.subr.mxu0 0.0
        %1563 = vmatpush2.msra.mxu0 0.0
        %1564 = vmatprep.subr.mxu0 0.0
        %1565 = vmatpush2.msra.mxu0 0.0
        %1566 = vmatprep.subr.mxu0 0.0
        %1567 = vmatpush2.msra.mxu0 0.0
        %1568 = vmatprep.subr.mxu0 0.0
        %1569 = vmatpush2.msra.mxu0 0.0
        %1570 = vmatprep.subr.mxu0 0.0
        %1571 = vmatpush2.msra.mxu0 0.0
        %1572 = vmatprep.subr.mxu0 0.0
        %1573 = vmatpush2.msra.mxu0 0.0
        %1574 = vmatprep.subr.mxu0 0.0
        %1575 = vmatpush2.msra.mxu0 0.0
        %1576 = vmatprep.subr.mxu0 0.0
        %1577 = vmatpush2.msra.mxu0 0.0
        %1578 = vmatprep.subr.mxu0 0.0
        %1579 = vmatpush2.msra.mxu0 0.0
        %1580 = vmatprep.subr.mxu0 0.0
        %1581 = vmatpush2.msra.mxu0 0.0
        %1582 = vmatprep.mubr.f32.mxu0 0.0
        %1583 = vmatmul.mubr.f32.gmra.mxu0 %v1516
        %v1584 = vpop.f32.mrf.mxu0
        %v1585 = vadd.f32 0.0, %v1584
        %v1586 = vpop.f32.mrf.mxu0
        %1587 = vdwg.mxu0
        %v1588 = vld [vmem:[#allocation5 + $0x110] sm:$0xf]
        %v1589 = vld [vmem:[#allocation5 + $0x114] sm:$0xf]
        %v1590 = vpack.c.bf16 %v1585, %v1585
        %v1593 = vunpack.c.l.b16 %v1588
        %v1594 = vunpack.c.l.b16 %v1589
        %v1595 = vpack.c.b16 %v1594, %v1593
        %v1598 = vsel %vm416, %v1590, 0
        %1600 = vmatprep.subr.bf16.mxu0 0
        %1601 = vmatpush1.bf16.msra.mxu0 0
        %1602 = vmatprep.subr.bf16.mxu0 0
        %1603 = vmatpush1.bf16.msra.mxu0 0
        %1604 = vmatprep.subr.bf16.mxu0 0
        %1605 = vmatpush1.bf16.msra.mxu0 0
        %1606 = vmatprep.subr.bf16.mxu0 0
        %1607 = vmatpush1.bf16.msra.mxu0 0
        %1608 = vmatprep.subr.bf16.mxu0 0
        %1609 = vmatpush1.bf16.msra.mxu0 0
        %1610 = vmatprep.subr.bf16.mxu0 0
        %1611 = vmatpush1.bf16.msra.mxu0 0
        %1612 = vmatprep.subr.bf16.mxu0 0
        %1613 = vmatpush1.bf16.msra.mxu0 0
        %1614 = vmatprep.subr.bf16.mxu0 0
        %1615 = vmatpush1.bf16.msra.mxu0 %v1595
        %1616 = vmatprep.subr.bf16.mxu0 0
        %1617 = vmatpush2.bf16.msra.mxu0 0
        %1618 = vmatprep.subr.bf16.mxu0 0
        %1619 = vmatpush2.bf16.msra.mxu0 0
        %1620 = vmatprep.subr.bf16.mxu0 0
        %1621 = vmatpush2.bf16.msra.mxu0 0
        %1622 = vmatprep.subr.bf16.mxu0 0
        %1623 = vmatpush2.bf16.msra.mxu0 0
        %1624 = vmatprep.subr.bf16.mxu0 0
        %1625 = vmatpush2.bf16.msra.mxu0 0
        %1626 = vmatprep.subr.bf16.mxu0 0
        %1627 = vmatpush2.bf16.msra.mxu0 0
        %1628 = vmatprep.subr.bf16.mxu0 0
        %1629 = vmatpush2.bf16.msra.mxu0 0
        %1630 = vmatprep.subr.bf16.mxu0 0
        %1631 = vmatpush2.bf16.msra.mxu0 0
        %1632 = vmatprep.mubr.bf16.mxu0 0
        %1633 = vmatmul.mubr.bf16.gmra.mxu0 %v1598
        %v1634 = vpop.f32.mrf.mxu0
        %v1635 = vadd.f32 0.0, %v1634
        %v1636 = vpop.f32.mrf.mxu0
        %v1637 = vpop.f32.mrf.mxu0
        %v1638 = vpop.f32.mrf.mxu0
        %1639 = vdwg.mxu0
        %v1640 = vadd.f32 %v1234, %v1635
        %v1641 = vld [vmem:[#allocation5 + $0xc0] sm:$0xf]
        %v1642 = vld [vmem:[#allocation5 + $0xc4] sm:$0xf]
        %v1643 = vld [vmem:[#allocation5 + $0xc8] sm:$0xf]
        %v1644 = vld [vmem:[#allocation5 + $0xcc] sm:$0xf]
        %v1645 = vld [vmem:[#allocation5 + $0xe0] sm:$0xf]
        %v1646 = vld [vmem:[#allocation5 + $0xe4] sm:$0xf]
        %v1647 = vld [vmem:[#allocation5 + $0xe8] sm:$0xf]
        %v1648 = vld [vmem:[#allocation5 + $0xec] sm:$0xf]
        %v1649 = vld [vmem:[#allocation5 + $0x100] sm:$0xf]
        %v1650 = vld [vmem:[#allocation5 + $0x104] sm:$0xf]
        %v1651 = vld [vmem:[#allocation5 + $0x108] sm:$0xf]
        %v1652 = vld [vmem:[#allocation5 + $0x10c] sm:$0xf]
        %v1653 = vlaneseq
        %v1654 = vshrl.u32 %v1653, 7
        %v1655 = vsub.s32 3, %v1654
        %v1656 = vrot.slane %v1248, %v1655
        %v1661 = vunpack.c.l.b16 %v1641
        %v1662 = vunpack.c.l.b16 %v1642
        %v1663 = vunpack.c.l.b16 %v1643
        %v1664 = vunpack.c.l.b16 %v1644
        %v1665 = vpack.c.b16 %v1662, %v1661
        %v1666 = vpack.c.b16 %v1664, %v1663
        %1669 = vmatprep.subr.bf16.mxu0 0
        %1670 = vmatpush1.bf16.msra.mxu0 0
        %1671 = vmatprep.subr.bf16.mxu0 0
        %1672 = vmatpush1.bf16.msra.mxu0 0
        %1673 = vmatprep.subr.bf16.mxu0 0
        %1674 = vmatpush1.bf16.msra.mxu0 0
        %1675 = vmatprep.subr.bf16.mxu0 0
        %1676 = vmatpush1.bf16.msra.mxu0 0
        %1677 = vmatprep.subr.bf16.mxu0 0
        %1678 = vmatpush1.bf16.msra.mxu0 0
        %1679 = vmatprep.subr.bf16.mxu0 0
        %1680 = vmatpush1.bf16.msra.mxu0 0
        %1681 = vmatprep.subr.bf16.mxu0 0
        %1682 = vmatpush1.bf16.msra.mxu0 %v1666
        %1683 = vmatprep.subr.bf16.mxu0 0
        %1684 = vmatpush1.bf16.msra.mxu0 %v1665
        %1685 = vmatprep.subr.bf16.mxu0 0
        %1686 = vmatpush2.bf16.msra.mxu0 0
        %1687 = vmatprep.subr.bf16.mxu0 0
        %1688 = vmatpush2.bf16.msra.mxu0 0
        %1689 = vmatprep.subr.bf16.mxu0 0
        %1690 = vmatpush2.bf16.msra.mxu0 0
        %1691 = vmatprep.subr.bf16.mxu0 0
        %1692 = vmatpush2.bf16.msra.mxu0 0
        %1693 = vmatprep.subr.bf16.mxu0 0
        %1694 = vmatpush2.bf16.msra.mxu0 0
        %1695 = vmatprep.subr.bf16.mxu0 0
        %1696 = vmatpush2.bf16.msra.mxu0 0
        %1697 = vmatprep.subr.bf16.mxu0 0
        %1698 = vmatpush2.bf16.msra.mxu0 0
        %1699 = vmatprep.subr.bf16.mxu0 0
        %1700 = vmatpush2.bf16.msra.mxu0 0
        %1701 = vmatprep.mubr.bf16.mxu0 0
        %1702 = vmatmul.mubr.bf16.gmra.mxu0 %v1270
        %v1703 = vpop.f32.mrf.mxu0
        %v1704 = vadd.f32 %v1656, %v1703
        %v1705 = vpop.f32.mrf.mxu0
        %v1706 = vpop.f32.mrf.mxu0
        %v1707 = vpop.f32.mrf.mxu0
        %1708 = vdwg.mxu0
        %v1709 = vlaneseq
        %v1710 = vshrl.u32 %v1709, 7
        %v1711 = vsub.s32 5, %v1710
        %v1712 = vrot.slane %v1250, %v1711
        %v1717 = vunpack.c.l.b16 %v1645
        %v1718 = vunpack.c.l.b16 %v1646
        %v1719 = vunpack.c.l.b16 %v1647
        %v1720 = vunpack.c.l.b16 %v1648
        %v1721 = vpack.c.b16 %v1718, %v1717
        %v1722 = vpack.c.b16 %v1720, %v1719
        %1725 = vmatprep.subr.bf16.mxu0 0
        %1726 = vmatpush1.bf16.msra.mxu0 0
        %1727 = vmatprep.subr.bf16.mxu0 0
        %1728 = vmatpush1.bf16.msra.mxu0 0
        %1729 = vmatprep.subr.bf16.mxu0 0
        %1730 = vmatpush1.bf16.msra.mxu0 0
        %1731 = vmatprep.subr.bf16.mxu0 0
        %1732 = vmatpush1.bf16.msra.mxu0 0
        %1733 = vmatprep.subr.bf16.mxu0 0
        %1734 = vmatpush1.bf16.msra.mxu0 0
        %1735 = vmatprep.subr.bf16.mxu0 0
        %1736 = vmatpush1.bf16.msra.mxu0 0
        %1737 = vmatprep.subr.bf16.mxu0 0
        %1738 = vmatpush1.bf16.msra.mxu0 %v1722
        %1739 = vmatprep.subr.bf16.mxu0 0
        %1740 = vmatpush1.bf16.msra.mxu0 %v1721
        %1741 = vmatprep.subr.bf16.mxu0 0
        %1742 = vmatpush2.bf16.msra.mxu0 0
        %1743 = vmatprep.subr.bf16.mxu0 0
        %1744 = vmatpush2.bf16.msra.mxu0 0
        %1745 = vmatprep.subr.bf16.mxu0 0
        %1746 = vmatpush2.bf16.msra.mxu0 0
        %1747 = vmatprep.subr.bf16.mxu0 0
        %1748 = vmatpush2.bf16.msra.mxu0 0
        %1749 = vmatprep.subr.bf16.mxu0 0
        %1750 = vmatpush2.bf16.msra.mxu0 0
        %1751 = vmatprep.subr.bf16.mxu0 0
        %1752 = vmatpush2.bf16.msra.mxu0 0
        %1753 = vmatprep.subr.bf16.mxu0 0
        %1754 = vmatpush2.bf16.msra.mxu0 0
        %1755 = vmatprep.subr.bf16.mxu0 0
        %1756 = vmatpush2.bf16.msra.mxu0 0
        %1757 = vmatprep.mubr.bf16.mxu0 0
        %1758 = vmatmul.mubr.bf16.gmra.mxu0 %v1329
        %v1759 = vpop.f32.mrf.mxu0
        %v1760 = vadd.f32 %v1712, %v1759
        %v1761 = vpop.f32.mrf.mxu0
        %v1762 = vpop.f32.mrf.mxu0
        %v1763 = vpop.f32.mrf.mxu0
        %1764 = vdwg.mxu0
        %v1765 = vlaneseq
        %v1766 = vshrl.u32 %v1765, 7
        %v1767 = vsub.s32 7, %v1766
        %v1768 = vrot.slane %v1252, %v1767
        %v1773 = vunpack.c.l.b16 %v1649
        %v1774 = vunpack.c.l.b16 %v1650
        %v1775 = vunpack.c.l.b16 %v1651
        %v1776 = vunpack.c.l.b16 %v1652
        %v1777 = vpack.c.b16 %v1774, %v1773
        %v1778 = vpack.c.b16 %v1776, %v1775
        %1781 = vmatprep.subr.bf16.mxu0 0
        %1782 = vmatpush1.bf16.msra.mxu0 0
        %1783 = vmatprep.subr.bf16.mxu0 0
        %1784 = vmatpush1.bf16.msra.mxu0 0
        %1785 = vmatprep.subr.bf16.mxu0 0
        %1786 = vmatpush1.bf16.msra.mxu0 0
        %1787 = vmatprep.subr.bf16.mxu0 0
        %1788 = vmatpush1.bf16.msra.mxu0 0
        %1789 = vmatprep.subr.bf16.mxu0 0
        %1790 = vmatpush1.bf16.msra.mxu0 0
        %1791 = vmatprep.subr.bf16.mxu0 0
        %1792 = vmatpush1.bf16.msra.mxu0 0
        %1793 = vmatprep.subr.bf16.mxu0 0
        %1794 = vmatpush1.bf16.msra.mxu0 %v1778
        %1795 = vmatprep.subr.bf16.mxu0 0
        %1796 = vmatpush1.bf16.msra.mxu0 %v1777
        %1797 = vmatprep.subr.bf16.mxu0 0
        %1798 = vmatpush2.bf16.msra.mxu0 0
        %1799 = vmatprep.subr.bf16.mxu0 0
        %1800 = vmatpush2.bf16.msra.mxu0 0
        %1801 = vmatprep.subr.bf16.mxu0 0
        %1802 = vmatpush2.bf16.msra.mxu0 0
        %1803 = vmatprep.subr.bf16.mxu0 0
        %1804 = vmatpush2.bf16.msra.mxu0 0
        %1805 = vmatprep.subr.bf16.mxu0 0
        %1806 = vmatpush2.bf16.msra.mxu0 0
        %1807 = vmatprep.subr.bf16.mxu0 0
        %1808 = vmatpush2.bf16.msra.mxu0 0
        %1809 = vmatprep.subr.bf16.mxu0 0
        %1810 = vmatpush2.bf16.msra.mxu0 0
        %1811 = vmatprep.subr.bf16.mxu0 0
        %1812 = vmatpush2.bf16.msra.mxu0 0
        %1813 = vmatprep.mubr.bf16.mxu0 0
        %1814 = vmatmul.mubr.bf16.gmra.mxu0 %v1329
        %v1815 = vpop.f32.mrf.mxu0
        %v1816 = vadd.f32 %v1768, %v1815
        %v1817 = vpop.f32.mrf.mxu0
        %v1818 = vpop.f32.mrf.mxu0
        %v1819 = vpop.f32.mrf.mxu0
        %1820 = vdwg.mxu0
        %v1822 = vsel %vm416, %v1704, 0
        %v1825 = vsel %vm416, %v1760, 0
        %1827 = vmatprep.subr.mxu0 0.0
        %1828 = vmatpush1.xpose.msra.mxu0 0.0
        %1829 = vmatprep.subr.mxu0 0.0
        %1830 = vmatpush1.xpose.msra.mxu0 0.0
        %1831 = vmatprep.subr.mxu0 0.0
        %1832 = vmatpush1.xpose.msra.mxu0 0.0
        %1833 = vmatprep.subr.mxu0 0.0
        %1834 = vmatpush1.xpose.msra.mxu0 0.0
        %1835 = vmatprep.subr.mxu0 0.0
        %1836 = vmatpush1.xpose.msra.mxu0 0.0
        %1837 = vmatprep.subr.mxu0 0.0
        %1838 = vmatpush1.xpose.msra.mxu0 0.0
        %1839 = vmatprep.subr.mxu0 0.0
        %1840 = vmatpush1.xpose.msra.mxu0 0.0
        %1841 = vmatprep.subr.mxu0 0.0
        %1842 = vmatpush1.xpose.msra.mxu0 0.0
        %1843 = vmatprep.subr.mxu0 0.0
        %1844 = vmatpush1.xpose.msra.mxu0 0.0
        %1845 = vmatprep.subr.mxu0 0.0
        %1846 = vmatpush1.xpose.msra.mxu0 0.0
        %1847 = vmatprep.subr.mxu0 0.0
        %1848 = vmatpush1.xpose.msra.mxu0 0.0
        %1849 = vmatprep.subr.mxu0 0.0
        %1850 = vmatpush1.xpose.msra.mxu0 0.0
        %1851 = vmatprep.subr.mxu0 0.0
        %1852 = vmatpush1.xpose.msra.mxu0 0.0
        %1853 = vmatprep.subr.mxu0 0.0
        %1854 = vmatpush1.xpose.msra.mxu0 0.0
        %1855 = vmatprep.subr.mxu0 0.0
        %1856 = vmatpush1.xpose.msra.mxu0 0.0
        %1857 = vmatprep.subr.mxu0 0.0
        %1858 = vmatpush1.xpose.msra.mxu0 %v1825
        %1859 = vmatprep.subr.mxu0 0.0
        %1860 = vmatpush2.xpose.msra.mxu0 0.0
        %1861 = vmatprep.subr.mxu0 0.0
        %1862 = vmatpush2.xpose.msra.mxu0 0.0
        %1863 = vmatprep.subr.mxu0 0.0
        %1864 = vmatpush2.xpose.msra.mxu0 0.0
        %1865 = vmatprep.subr.mxu0 0.0
        %1866 = vmatpush2.xpose.msra.mxu0 0.0
        %1867 = vmatprep.subr.mxu0 0.0
        %1868 = vmatpush2.xpose.msra.mxu0 0.0
        %1869 = vmatprep.subr.mxu0 0.0
        %1870 = vmatpush2.xpose.msra.mxu0 0.0
        %1871 = vmatprep.subr.mxu0 0.0
        %1872 = vmatpush2.xpose.msra.mxu0 0.0
        %1873 = vmatprep.subr.mxu0 0.0
        %1874 = vmatpush2.xpose.msra.mxu0 0.0
        %1875 = vmatprep.subr.mxu0 0.0
        %1876 = vmatpush2.xpose.msra.mxu0 0.0
        %1877 = vmatprep.subr.mxu0 0.0
        %1878 = vmatpush2.xpose.msra.mxu0 0.0
        %1879 = vmatprep.subr.mxu0 0.0
        %1880 = vmatpush2.xpose.msra.mxu0 0.0
        %1881 = vmatprep.subr.mxu0 0.0
        %1882 = vmatpush2.xpose.msra.mxu0 0.0
        %1883 = vmatprep.subr.mxu0 0.0
        %1884 = vmatpush2.xpose.msra.mxu0 0.0
        %1885 = vmatprep.subr.mxu0 0.0
        %1886 = vmatpush2.xpose.msra.mxu0 0.0
        %1887 = vmatprep.subr.mxu0 0.0
        %1888 = vmatpush2.xpose.msra.mxu0 0.0
        %1889 = vmatprep.subr.mxu0 0.0
        %1890 = vmatpush2.xpose.msra.mxu0 0.0
        %1891 = vmatprep.mubr.f32.mxu0 0.0
        %1892 = vmatmul.mubr.f32.gmra.mxu0 %v1822
        %v1893 = vpop.f32.mrf.mxu0
        %v1894 = vadd.f32 0.0, %v1893
        %v1895 = vpop.f32.mrf.mxu0
        %1896 = vdwg.mxu0
        %v1897 = vsel %vm179, %v1894, -1e+30
        %v1898 = vsel %vm494, %v1897, -inf
        %1899 = vmax.xlane.f32.xlu0 %v1898
        %v1900 = vpop.xlane.xlu0 %1899
        %v1901 = vsub.f32 %v1897, %v1900
        %v1902 = vmul.f32 %v1901, 1.442695
        %v1903 = vpow.pop %v1902
        %v1904 = vsel %vm494, %v1903, 0.0
        %1905 = vadd.xlane.f32.xlu0 %v1904
        %v1906 = vpop.xlane.xlu0 %1905
        %v1907 = vrcp.pop %v1906
        %v1908 = vmul.f32 %v1903, %v1907
        %v1910 = vsel %vm494, %v1908, 0
        %1912 = vmatprep.subr.mxu0 0.0
        %1913 = vmatpush1.msra.mxu0 0.0
        %1914 = vmatprep.subr.mxu0 0.0
        %1915 = vmatpush1.msra.mxu0 0.0
        %1916 = vmatprep.subr.mxu0 0.0
        %1917 = vmatpush1.msra.mxu0 0.0
        %1918 = vmatprep.subr.mxu0 0.0
        %1919 = vmatpush1.msra.mxu0 0.0
        %1920 = vmatprep.subr.mxu0 0.0
        %1921 = vmatpush1.msra.mxu0 0.0
        %1922 = vmatprep.subr.mxu0 0.0
        %1923 = vmatpush1.msra.mxu0 0.0
        %1924 = vmatprep.subr.mxu0 0.0
        %1925 = vmatpush1.msra.mxu0 0.0
        %1926 = vmatprep.subr.mxu0 0.0
        %1927 = vmatpush1.msra.mxu0 0.0
        %1928 = vmatprep.subr.mxu0 0.0
        %1929 = vmatpush1.msra.mxu0 0.0
        %1930 = vmatprep.subr.mxu0 0.0
        %1931 = vmatpush1.msra.mxu0 0.0
        %1932 = vmatprep.subr.mxu0 0.0
        %1933 = vmatpush1.msra.mxu0 0.0
        %1934 = vmatprep.subr.mxu0 0.0
        %1935 = vmatpush1.msra.mxu0 0.0
        %1936 = vmatprep.subr.mxu0 0.0
        %1937 = vmatpush1.msra.mxu0 0.0
        %1938 = vmatprep.subr.mxu0 0.0
        %1939 = vmatpush1.msra.mxu0 0.0
        %1940 = vmatprep.subr.mxu0 0.0
        %1941 = vmatpush1.msra.mxu0 0.0
        %1942 = vmatprep.subr.mxu0 0.0
        %1943 = vmatpush1.msra.mxu0 %v1816
        %1944 = vmatprep.subr.mxu0 0.0
        %1945 = vmatpush2.msra.mxu0 0.0
        %1946 = vmatprep.subr.mxu0 0.0
        %1947 = vmatpush2.msra.mxu0 0.0
        %1948 = vmatprep.subr.mxu0 0.0
        %1949 = vmatpush2.msra.mxu0 0.0
        %1950 = vmatprep.subr.mxu0 0.0
        %1951 = vmatpush2.msra.mxu0 0.0
        %1952 = vmatprep.subr.mxu0 0.0
        %1953 = vmatpush2.msra.mxu0 0.0
        %1954 = vmatprep.subr.mxu0 0.0
        %1955 = vmatpush2.msra.mxu0 0.0
        %1956 = vmatprep.subr.mxu0 0.0
        %1957 = vmatpush2.msra.mxu0 0.0
        %1958 = vmatprep.subr.mxu0 0.0
        %1959 = vmatpush2.msra.mxu0 0.0
        %1960 = vmatprep.subr.mxu0 0.0
        %1961 = vmatpush2.msra.mxu0 0.0
        %1962 = vmatprep.subr.mxu0 0.0
        %1963 = vmatpush2.msra.mxu0 0.0
        %1964 = vmatprep.subr.mxu0 0.0
        %1965 = vmatpush2.msra.mxu0 0.0
        %1966 = vmatprep.subr.mxu0 0.0
        %1967 = vmatpush2.msra.mxu0 0.0
        %1968 = vmatprep.subr.mxu0 0.0
        %1969 = vmatpush2.msra.mxu0 0.0
        %1970 = vmatprep.subr.mxu0 0.0
        %1971 = vmatpush2.msra.mxu0 0.0
        %1972 = vmatprep.subr.mxu0 0.0
        %1973 = vmatpush2.msra.mxu0 0.0
        %1974 = vmatprep.subr.mxu0 0.0
        %1975 = vmatpush2.msra.mxu0 0.0
        %1976 = vmatprep.mubr.f32.mxu0 0.0
        %1977 = vmatmul.mubr.f32.gmra.mxu0 %v1910
        %v1978 = vpop.f32.mrf.mxu0
        %v1979 = vadd.f32 0.0, %v1978
        %v1980 = vpop.f32.mrf.mxu0
        %1981 = vdwg.mxu0
        %v1982 = vld [vmem:[#allocation5 + $0x118] sm:$0xf]
        %v1983 = vld [vmem:[#allocation5 + $0x11c] sm:$0xf]
        %v1984 = vpack.c.bf16 %v1979, %v1979
        %v1987 = vunpack.c.l.b16 %v1982
        %v1988 = vunpack.c.l.b16 %v1983
        %v1989 = vpack.c.b16 %v1988, %v1987
        %v1992 = vsel %vm416, %v1984, 0
        %1994 = vmatprep.subr.bf16.mxu0 0
        %1995 = vmatpush1.bf16.msra.mxu0 0
        %1996 = vmatprep.subr.bf16.mxu0 0
        %1997 = vmatpush1.bf16.msra.mxu0 0
        %1998 = vmatprep.subr.bf16.mxu0 0
        %1999 = vmatpush1.bf16.msra.mxu0 0
        %2000 = vmatprep.subr.bf16.mxu0 0
        %2001 = vmatpush1.bf16.msra.mxu0 0
        %2002 = vmatprep.subr.bf16.mxu0 0
        %2003 = vmatpush1.bf16.msra.mxu0 0
        %2004 = vmatprep.subr.bf16.mxu0 0
        %2005 = vmatpush1.bf16.msra.mxu0 0
        %2006 = vmatprep.subr.bf16.mxu0 0
        %2007 = vmatpush1.bf16.msra.mxu0 0
        %2008 = vmatprep.subr.bf16.mxu0 0
        %2009 = vmatpush1.bf16.msra.mxu0 %v1989
        %2010 = vmatprep.subr.bf16.mxu0 0
        %2011 = vmatpush2.bf16.msra.mxu0 0
        %2012 = vmatprep.subr.bf16.mxu0 0
        %2013 = vmatpush2.bf16.msra.mxu0 0
        %2014 = vmatprep.subr.bf16.mxu0 0
        %2015 = vmatpush2.bf16.msra.mxu0 0
        %2016 = vmatprep.subr.bf16.mxu0 0
        %2017 = vmatpush2.bf16.msra.mxu0 0
        %2018 = vmatprep.subr.bf16.mxu0 0
        %2019 = vmatpush2.bf16.msra.mxu0 0
        %2020 = vmatprep.subr.bf16.mxu0 0
        %2021 = vmatpush2.bf16.msra.mxu0 0
        %2022 = vmatprep.subr.bf16.mxu0 0
        %2023 = vmatpush2.bf16.msra.mxu0 0
        %2024 = vmatprep.subr.bf16.mxu0 0
        %2025 = vmatpush2.bf16.msra.mxu0 0
        %2026 = vmatprep.mubr.bf16.mxu0 0
        %2027 = vmatmul.mubr.bf16.gmra.mxu0 %v1992
        %v2028 = vpop.f32.mrf.mxu0
        %v2029 = vadd.f32 0.0, %v2028
        %v2030 = vpop.f32.mrf.mxu0
        %v2031 = vpop.f32.mrf.mxu0
        %v2032 = vpop.f32.mrf.mxu0
        %2033 = vdwg.mxu0
        %v2034 = vadd.f32 %v1640, %v2029
        %v2035 = vadd.f32 %v1228, %v2034
        %v2036 = vsel %vm193, %v2035, 0.0
        %2037 = vadd.xlane.f32.xlu0 %v2036
        %v2038 = vpop.xlane.xlu0 %2037
        %v2039 = vmul.f32 %v2038, %v197
        %v2040 = vsub.f32 %v2035, %v2039
        %v2041 = vmul.f32 %v2040, %v2040
        %v2042 = vsel %vm193, %v2041, 0.0
        %2043 = vadd.xlane.f32.xlu0 %v2042
        %v2044 = vpop.xlane.xlu0 %2043
        %v2045 = vmul.f32 %v2044, %v197
        %v2046 = vadd.f32 %v2045, 1e-05
        %v2047 = vrsqrt.pop %v2046
        %v2048 = vmul.f32 %v2040, %v2047
        %v2049 = vlaneseq
        %v2050 = vshrl.u32 %v2049, 7
        %v2051 = vsub.s32 1, %v2050
        %v2052 = vrot.slane %v1201, %v2051
        %v2053 = vmul.f32 %v2048, %v2052
        %v2054 = vlaneseq
        %v2055 = vshrl.u32 %v2054, 7
        %v2056 = vsub.s32 2, %v2055
        %v2057 = vrot.slane %v1203, %v2056
        %v2058 = vadd.f32 %v2053, %v2057
        %v2059 = vld [vmem:[#allocation5 + $0x120] sm:$0xf]
        %v2060 = vld [vmem:[#allocation5 + $0x124] sm:$0xf]
        %v2061 = vld [vmem:[#allocation5 + $0x128] sm:$0xf]
        %v2062 = vld [vmem:[#allocation5 + $0x12c] sm:$0xf]
        %v2063 = vld [vmem:[#allocation5 + $0x130] sm:$0xf]
        %v2064 = vld [vmem:[#allocation5 + $0x134] sm:$0xf]
        %v2065 = vld [vmem:[#allocation5 + $0x138] sm:$0xf]
        %v2066 = vld [vmem:[#allocation5 + $0x13c] sm:$0xf]
        %v2067 = vld [vmem:[#allocation5 + $0x140] sm:$0xf]
        %v2068 = vld [vmem:[#allocation5 + $0x144] sm:$0xf]
        %v2069 = vld [vmem:[#allocation5 + $0x148] sm:$0xf]
        %v2070 = vld [vmem:[#allocation5 + $0x14c] sm:$0xf]
        %v2071 = vpack.c.bf16 %v2058, %v2058
        %v2072 = vlaneseq
        %v2073 = vshrl.u32 %v2072, 7
        %v2074 = vsub.s32 3, %v2073
        %v2075 = vrot.slane %v1203, %v2074
        %v2080 = vunpack.c.l.b16 %v2059
        %v2081 = vunpack.c.l.b16 %v2060
        %v2082 = vunpack.c.l.b16 %v2061
        %v2083 = vunpack.c.l.b16 %v2062
        %v2084 = vpack.c.b16 %v2081, %v2080
        %v2085 = vpack.c.b16 %v2083, %v2082
        %v2089 = vsel %vm193, %v2071, 0
        %2091 = vmatprep.subr.bf16.mxu0 0
        %2092 = vmatpush1.bf16.msra.mxu0 0
        %2093 = vmatprep.subr.bf16.mxu0 0
        %2094 = vmatpush1.bf16.msra.mxu0 0
        %2095 = vmatprep.subr.bf16.mxu0 0
        %2096 = vmatpush1.bf16.msra.mxu0 0
        %2097 = vmatprep.subr.bf16.mxu0 0
        %2098 = vmatpush1.bf16.msra.mxu0 0
        %2099 = vmatprep.subr.bf16.mxu0 0
        %2100 = vmatpush1.bf16.msra.mxu0 0
        %2101 = vmatprep.subr.bf16.mxu0 0
        %2102 = vmatpush1.bf16.msra.mxu0 0
        %2103 = vmatprep.subr.bf16.mxu0 0
        %2104 = vmatpush1.bf16.msra.mxu0 %v2085
        %2105 = vmatprep.subr.bf16.mxu0 0
        %2106 = vmatpush1.bf16.msra.mxu0 %v2084
        %2107 = vmatprep.subr.bf16.mxu0 0
        %2108 = vmatpush2.bf16.msra.mxu0 0
        %2109 = vmatprep.subr.bf16.mxu0 0
        %2110 = vmatpush2.bf16.msra.mxu0 0
        %2111 = vmatprep.subr.bf16.mxu0 0
        %2112 = vmatpush2.bf16.msra.mxu0 0
        %2113 = vmatprep.subr.bf16.mxu0 0
        %2114 = vmatpush2.bf16.msra.mxu0 0
        %2115 = vmatprep.subr.bf16.mxu0 0
        %2116 = vmatpush2.bf16.msra.mxu0 0
        %2117 = vmatprep.subr.bf16.mxu0 0
        %2118 = vmatpush2.bf16.msra.mxu0 0
        %2119 = vmatprep.subr.bf16.mxu0 0
        %2120 = vmatpush2.bf16.msra.mxu0 0
        %2121 = vmatprep.subr.bf16.mxu0 0
        %2122 = vmatpush2.bf16.msra.mxu0 0
        %2123 = vmatprep.mubr.bf16.mxu0 0
        %2124 = vmatmul.mubr.bf16.gmra.mxu0 %v2089
        %v2125 = vpop.f32.mrf.mxu0
        %v2126 = vadd.f32 %v2075, %v2125
        %v2127 = vpop.f32.mrf.mxu0
        %v2128 = vpop.f32.mrf.mxu0
        %v2129 = vpop.f32.mrf.mxu0
        %2130 = vdwg.mxu0
        %v2131 = vmax.f32 %v2126, 0.0
        %v2132 = vpack.c.bf16 %v2131, %v2131
        %v2141 = vunpack.c.l.b16 %v2063
        %v2142 = vunpack.c.l.b16 %v2064
        %v2143 = vunpack.c.l.b16 %v2065
        %v2144 = vunpack.c.l.b16 %v2066
        %v2145 = vunpack.c.l.b16 %v2067
        %v2146 = vunpack.c.l.b16 %v2068
        %v2147 = vunpack.c.l.b16 %v2069
        %v2148 = vunpack.c.l.b16 %v2070
        %v2149 = vpack.c.b16 %v2142, %v2141
        %v2150 = vpack.c.b16 %v2144, %v2143
        %v2151 = vpack.c.b16 %v2146, %v2145
        %v2152 = vpack.c.b16 %v2148, %v2147
        %v2158 = vsel %vm1148, %v2132, 0
        %2160 = vmatprep.subr.bf16.mxu0 0
        %2161 = vmatpush1.bf16.msra.mxu0 0
        %2162 = vmatprep.subr.bf16.mxu0 0
        %2163 = vmatpush1.bf16.msra.mxu0 0
        %2164 = vmatprep.subr.bf16.mxu0 0
        %2165 = vmatpush1.bf16.msra.mxu0 0
        %2166 = vmatprep.subr.bf16.mxu0 0
        %2167 = vmatpush1.bf16.msra.mxu0 0
        %2168 = vmatprep.subr.bf16.mxu0 0
        %2169 = vmatpush1.bf16.msra.mxu0 %v2152
        %2170 = vmatprep.subr.bf16.mxu0 0
        %2171 = vmatpush1.bf16.msra.mxu0 %v2151
        %2172 = vmatprep.subr.bf16.mxu0 0
        %2173 = vmatpush1.bf16.msra.mxu0 %v2150
        %2174 = vmatprep.subr.bf16.mxu0 0
        %2175 = vmatpush1.bf16.msra.mxu0 %v2149
        %2176 = vmatprep.subr.bf16.mxu0 0
        %2177 = vmatpush2.bf16.msra.mxu0 0
        %2178 = vmatprep.subr.bf16.mxu0 0
        %2179 = vmatpush2.bf16.msra.mxu0 0
        %2180 = vmatprep.subr.bf16.mxu0 0
        %2181 = vmatpush2.bf16.msra.mxu0 0
        %2182 = vmatprep.subr.bf16.mxu0 0
        %2183 = vmatpush2.bf16.msra.mxu0 0
        %2184 = vmatprep.subr.bf16.mxu0 0
        %2185 = vmatpush2.bf16.msra.mxu0 0
        %2186 = vmatprep.subr.bf16.mxu0 0
        %2187 = vmatpush2.bf16.msra.mxu0 0
        %2188 = vmatprep.subr.bf16.mxu0 0
        %2189 = vmatpush2.bf16.msra.mxu0 0
        %2190 = vmatprep.subr.bf16.mxu0 0
        %2191 = vmatpush2.bf16.msra.mxu0 0
        %2192 = vmatprep.mubr.bf16.mxu0 0
        %2193 = vmatmul.mubr.bf16.gmra.mxu0 %v2158
        %v2194 = vpop.f32.mrf.mxu0
        %v2195 = vadd.f32 0.0, %v2194
        %v2196 = vpop.f32.mrf.mxu0
        %v2197 = vpop.f32.mrf.mxu0
        %v2198 = vpop.f32.mrf.mxu0
        %2199 = vdwg.mxu0
        %v2200 = vadd.f32 %v2058, %v2195
        %v2201 = vlaneseq
        %v2202 = vshrl.u32 %v2201, 7
        %v2203 = vsub.s32 4, %v2202
        %v2204 = vrot.slane %v1205, %v2203
        %v2205 = vadd.f32 %v2200, %v2204
        %2206 = vst.msk [vmem:[%s173] sm:$0xff] %vm193, %v2205
        %s2207 = sand.u32 %s75, 1
        %s2208 = scalar_lea.sflag [#allocation4], %s2207
        %s2209 = sand.u32 %s75, 1
        %s2210 = smul.addr %s2209, 8
        %s2211 = scalar_lea.vmem [#allocation7], %s2210
        // Predicated region
        $region37: #{transformer_forward.1} parent=27 // pred_check
          %p2212 = pneg %p85
        $region38: #{transformer_forward.1} parent=27 // pred_check_branch
          %2214 = sbr.rel (%p2212) target = $region40
        $region39: #{transformer_forward.1} parent=27 // pred_region
          %s2216 = ssub.s32 128, 128
          %2217 = vsyncadd %s2208, %s2216
          %s2218 = smul.addr %s20, 128
          %s2219 = scalar_lea.hbm %s2, %s2218
          %s2221 = sshll.u32 %s2211, 4
          %s2222 = int_to_ptr.vmem [resolvable:$true] %s2221
          %2224 = dma.vmem_to_hbm [thread:$0]  %s2222, 128, %s2219, %s2208
        $region40: #{transformer_forward.1} parent=27 // pred_fallthru
          _
      $region28: #{transformer_forward.1} parent=5 // pred_fallthru
        _
      %p2225 = scmp.le.s32.totalorder 2, %s15
      // Predicated region
      $region41: #{transformer_forward.1} parent=5 // pred_check
        %p2226 = pneg %p2225
      $region42: #{transformer_forward.1} parent=5 // pred_check_branch
        %2228 = sbr.rel (%p2226) target = $region44
      $region43: #{transformer_forward.1} parent=5 // pred_region
        %s2229 = ssub.s32 %s15, 2
        // Predicated region
        $region45: #{transformer_forward.1} parent=43 // pred_check
          %p2230 = pneg %p91
        $region46: #{transformer_forward.1} parent=43 // pred_check_branch
          %2232 = sbr.rel (%p2230) target = $region48
        $region47: #{transformer_forward.1} parent=43 // pred_region
          %s2233 = sand.u32 %s76, 1
          %s2234 = scalar_lea.sflag [#allocation4], %s2233
          %s2235 = sand.u32 %s76, 1
          %s2236 = smul.addr %s2235, 8
          %s2237 = scalar_lea.vmem [#allocation7], %s2236
          %2238 = dma.done %s2234, 128
        $region48: #{transformer_forward.1} parent=43 // pred_fallthru
          _
      $region44: #{transformer_forward.1} parent=5 // pred_fallthru
        _
    $region6: #{transformer_forward.1} parent=1 // loop_footer
      %s19 = sadd.s32 1, %s15
    $region7: #{transformer_forward.1} parent=1 // loop_footer_branch
      %14 = sbr.rel target = $region3
    $region8: #{transformer_forward.1} parent=1 // loop_exit
      _
    %2239 = vsyncpa [#allocation3], 1
    %s2240 = scalar_lea.sflag [#allocation3], 1
    %2241 = vsyncpa %s2240, 1
    %2242 = vsyncpa [#allocation6], 1
    %2243 = vsyncpa [#allocation4], 1
    %s2244 = scalar_lea.sflag [#allocation4], 1
    %2245 = vsyncpa %s2244, 1

</llo_original>
